<compile_context>
chip_gen: v7x
topology: tpu7x:2x2x1
jax: 0.10.0
libtpu: 0.0.40
codegen_flags: <defaults>
</compile_context>

<pallas_src>
import jax
import jax.numpy as jnp
from jax.experimental import pallas as pl
from jax.experimental.pallas import tpu as pltpu

# Small shapes consistent with the module (n_layers=2, n_output=1).
B, S, D, H, O = 2, 8, 8, 32, 1
BP = 8            # batch rows padded to one sublane tile
DP = 128          # input features padded to one lane tile
GJ = 8 * H        # 256: joint (layer-1 x layer-2) interleaved gate width

# Row offsets inside the single packed weight buffer (all 8-aligned).
R_WIH, R_BIAS, R_WBIG, R_WOUT, R_BOUT, R_TOT = 0, 128, 136, 200, 264, 272


def lstm_kernel(x_ref, w_ref, o_ref, xp_ref, hall_ref):
    # ---- hoisted layer-1 input projection: one matmul for all S+1 steps ----
    # Written directly in the interleaved joint-gate layout
    #   cols: [i1 i2 f1 f2 g1 g2 o1 o2]  (each H=32 wide).
    # Layer-2 columns of the projection weight are zero, so those columns of
    # xp carry exactly b2 — the per-step layer-2 bias the fused loop needs.
    xp_ref[...] = (jnp.dot(x_ref[...], w_ref[R_WIH:R_WIH + DP, :],
                           preferred_element_type=jnp.float32)
                   + w_ref[R_BIAS:R_BIAS + 1, :])

    # Fused recurrent weight: [h1 | h2] (2H) -> joint gates (8H).
    w_big = w_ref[R_WBIG:R_WBIG + 2 * H, :]                    # (64, 256)

    # Hoisted constant masks (broadcast_in_dim is not CSE'd — build once).
    lane_j = jax.lax.broadcasted_iota(jnp.int32, (1, GJ), 1)
    g_scale = jnp.where((lane_j >= 4 * H) & (lane_j < 6 * H), 2.0, 1.0)
    lane_h = jax.lax.broadcasted_iota(jnp.int32, (1, 2 * H), 1)
    l1_mask = (lane_h < H).astype(jnp.float32)                 # keep layer-1 half

    def joint_gates(g, ccat):
        # Single EUP sigmoid pass over the whole joint gate tensor; tanh gates
        # recovered as tanh(x) = 2*sigmoid(2x) - 1 (g-columns pre-scaled by 2).
        sg = jax.nn.sigmoid(g * g_scale)                       # (BP, 8H)
        icat = sg[:, 0:2 * H]                                  # [i1 | i2]
        fcat = sg[:, 2 * H:4 * H]                              # [f1 | f2]
        ggcat = 2.0 * sg[:, 4 * H:6 * H] - 1.0                 # [g1 | g2]
        ocat = sg[:, 6 * H:8 * H]                              # [o1 | o2]
        c_new = fcat * ccat + icat * ggcat                     # [c1 | c2]
        h_new = ocat * jnp.tanh(c_new)                         # [h1 | h2]
        return h_new, c_new

    # ---- prologue ("step -1"): all states zero, so no recurrent matmul ----
    h0, c0 = joint_gates(xp_ref[0:BP, :], jnp.zeros((BP, 2 * H), jnp.float32))
    hcat = h0 * l1_mask                                        # [h1[0] | 0]
    ccat = c0 * l1_mask                                        # [c1[0] | 0]

    # ---- fully unrolled recurrence: ONE fused MXU dot per time step ----
    # Left gate columns of m feed layer-1 at t+1, right columns feed layer-2 at t.
    for t in range(S):                                         # static unroll
        m = jnp.dot(hcat, w_big, preferred_element_type=jnp.float32)
        g = m + xp_ref[(t + 1) * BP:(t + 2) * BP, :]
        hcat, ccat = joint_gates(g, ccat)                      # -> [h1[t+1] | h2[t]]
        hall_ref[t * BP:(t + 1) * BP, :] = hcat

    # ---- hoisted output Linear over the whole sequence (lane-dense store) ----
    # Only the h2 half (rows H:2H) of the packed W_out is nonzero; only lane 0
    # of the 128-wide output carries the real y.
    o_ref[...] = (jnp.dot(hall_ref[...], w_ref[R_WOUT:R_WOUT + 2 * H, 0:128],
                          preferred_element_type=jnp.float32)
                  + w_ref[R_BOUT:R_BOUT + 1, 0:128])


def rnn_forward(x, wbuf):
    # (B, S, D) -> time-major, batch padded to 8 sublanes, lanes padded to 128,
    # plus one trailing zero time step (consumed by the fused t/t+1 pipeline).
    x_tm = jnp.transpose(x, (1, 0, 2))                                  # (S, B, D)
    x_tm = jnp.pad(x_tm, ((0, 1), (0, BP - B), (0, DP - D)))            # (S+1, BP, DP)
    x_flat = x_tm.reshape((S + 1) * BP, DP)

    vmem = pl.BlockSpec(memory_space=pltpu.MemorySpace.VMEM)
    out = pl.pallas_call(
        lstm_kernel,
        out_shape=jax.ShapeDtypeStruct((S * BP, 128), jnp.float32),
        in_specs=[vmem, vmem],                                          # 2 inputs
        out_specs=vmem,
        scratch_shapes=[pltpu.VMEM(((S + 1) * BP, GJ), jnp.float32),    # xproj
                        pltpu.VMEM((S * BP, 2 * H), jnp.float32)],      # h history
    )(x_flat, wbuf)
    # (S*BP, 128) -> (S, BP, 128) -> valid batch rows, lane 0 -> (B, S, O)
    return jnp.transpose(out.reshape(S, BP, 128)[:, :B, :O], (1, 0, 2))


def _perm_cols(w, layer):
    """Scatter a (..., 4H) i,f,g,o-ordered block into the (..., 8H) interleaved
    joint layout [i1 i2 f1 f2 g1 g2 o1 o2]."""
    out = jnp.zeros(w.shape[:-1] + (GJ,), jnp.float32)
    for q in range(4):
        dst = q * 2 * H + layer * H
        out = out.at[..., dst:dst + H].set(w[..., q * H:(q + 1) * H])
    return out


def pack_weights(p):
    wih = _perm_cols(p["W_ih_l0"].T, 0)                                   # (D, 8H)
    bias = (_perm_cols((p["b_ih_l0"] + p["b_hh_l0"])[None, :], 0)
            + _perm_cols((p["b_ih_l1"] + p["b_hh_l1"])[None, :], 1))      # (1, 8H)
    w_big = jnp.concatenate(
        [_perm_cols(p["W_hh_l0"].T, 0) + _perm_cols(p["W_ih_l1"].T, 1),   # h1 rows
         _perm_cols(p["W_hh_l1"].T, 1)],                                  # h2 rows
        axis=0)                                                           # (2H, 8H)
    wbuf = jnp.zeros((R_TOT, GJ), jnp.float32)
    wbuf = wbuf.at[R_WIH:R_WIH + D, :].set(wih)
    wbuf = wbuf.at[R_BIAS:R_BIAS + 1, :].set(bias)
    wbuf = wbuf.at[R_WBIG:R_WBIG + 2 * H, :].set(w_big)
    wbuf = wbuf.at[R_WOUT + H:R_WOUT + 2 * H, 0:O].set(p["W_out"].T)      # h2 half only
    wbuf = wbuf.at[R_BOUT, 0:O].set(p["b_out"])
    return wbuf


def init_params(key):
    # PyTorch nn.LSTM / nn.Linear parameter shapes, deterministic uniform init.
    scale = 1.0 / jnp.sqrt(jnp.float32(H))
    ks = jax.random.split(key, 10)
    u = lambda k, shp: jax.random.uniform(k, shp, jnp.float32, -scale, scale)
    p = dict(
        W_ih_l0=u(ks[0], (4 * H, D)), W_hh_l0=u(ks[1], (4 * H, H)),
        b_ih_l0=u(ks[2], (4 * H,)),   b_hh_l0=u(ks[3], (4 * H,)),
        W_ih_l1=u(ks[4], (4 * H, H)), W_hh_l1=u(ks[5], (4 * H, H)),
        b_ih_l1=u(ks[6], (4 * H,)),   b_hh_l1=u(ks[7], (4 * H,)),
        W_out=u(ks[8], (O, H)),       b_out=u(ks[9], (O,)),
    )
    return p, pack_weights(p)


def reference(x, p):
    # Pure-JAX reference mirroring torch.nn.LSTM(batch_first=True) + Linear.
    def cell(x_t, h, c, Wih, Whh, bih, bhh):
        g = x_t @ Wih.T + h @ Whh.T + bih + bhh
        i, f, gg, o = jnp.split(g, 4, axis=-1)
        i, f, o = jax.nn.sigmoid(i), jax.nn.sigmoid(f), jax.nn.sigmoid(o)
        gg = jnp.tanh(gg)
        c = f * c + i * gg
        h = o * jnp.tanh(c)
        return h, c

    h1 = jnp.zeros((B, H)); c1 = jnp.zeros((B, H))
    h2 = jnp.zeros((B, H)); c2 = jnp.zeros((B, H))
    outs = []
    for t in range(S):
        h1, c1 = cell(x[:, t, :], h1, c1, p["W_ih_l0"], p["W_hh_l0"],
                      p["b_ih_l0"], p["b_hh_l0"])
        h2, c2 = cell(h1, h2, c2, p["W_ih_l1"], p["W_hh_l1"],
                      p["b_ih_l1"], p["b_hh_l1"])
        outs.append(h2 @ p["W_out"].T + p["b_out"])
    return jnp.stack(outs, axis=1)  # (B, S, O)


if __name__ == "__main__":
    key = jax.random.PRNGKey(0)
    kx, kp = jax.random.split(key)
    x = jax.random.normal(kx, (B, S, D), jnp.float32)
    p, wbuf = init_params(kp)

    out = rnn_forward(x, wbuf)
    out = jax.block_until_ready(out)

    ref = reference(x, p)
    assert out.shape == (B, S, O), out.shape
    assert jnp.allclose(out, ref, rtol=1e-4, atol=1e-4), \
        float(jnp.max(jnp.abs(out - ref)))
    print("KERNEL_OK")
</pallas_src>

<mosaic_0001>
module attributes {stable_mosaic.version = 11 : i64} {
  func.func @lstm_kernel(%arg0: memref<72x128xf32, #tpu.memory_space<vmem>>, %arg1: memref<272x256xf32, #tpu.memory_space<vmem>>, %arg2: memref<64x128xf32, #tpu.memory_space<vmem>>, %arg3: memref<72x256xf32, #tpu.memory_space<vmem>>, %arg4: memref<64x64xf32, #tpu.memory_space<vmem>>) attributes {dimension_semantics = [], scalar_prefetch = 0 : i64, scratch_operands = 2 : i64, tpu.core_type = #tpu.core_type<tc>} {
    %c0 = arith.constant 0 : index
    %c0_0 = arith.constant 0 : index
    %0 = vector.load %arg0[%c0, %c0_0] : memref<72x128xf32, #tpu.memory_space<vmem>>, vector<72x128xf32>
    %c0_1 = arith.constant 0 : index
    %c0_2 = arith.constant 0 : index
    %1 = vector.load %arg1[%c0_1, %c0_2] : memref<272x256xf32, #tpu.memory_space<vmem>>, vector<128x256xf32>
    %cst = arith.constant dense<0.000000e+00> : vector<72x256xf32>
    %2 = tpu.matmul %0, %1, %cst {dimension_numbers = #tpu.dot_dimension_numbers<[1], [0], [0], [1], [0, 0, 1, 1], [], []>} : vector<72x128xf32>, vector<128x256xf32>, vector<72x256xf32> -> vector<72x256xf32>
    %c128 = arith.constant 128 : index
    %c0_3 = arith.constant 0 : index
    %3 = vector.load %arg1[%c128, %c0_3] : memref<272x256xf32, #tpu.memory_space<vmem>>, vector<1x256xf32>
    %4 = vector.broadcast %3 : vector<1x256xf32> to vector<72x256xf32>
    %5 = arith.addf %2, %4 : vector<72x256xf32>
    %c0_4 = arith.constant 0 : index
    %c0_5 = arith.constant 0 : index
    %6 = vector.load %arg3[%c0_4, %c0_5] : memref<72x256xf32, #tpu.memory_space<vmem>>, vector<72x256xf32>
    tpu.vector_store %arg3[%c0_4, %c0_5], %5 {strides = array<i32>} : memref<72x256xf32, #tpu.memory_space<vmem>>, vector<72x256xf32>,
    %c136 = arith.constant 136 : index
    %c0_6 = arith.constant 0 : index
    %7 = vector.load %arg1[%c136, %c0_6] : memref<272x256xf32, #tpu.memory_space<vmem>>, vector<64x256xf32>
    %8 = tpu.iota {dimensions = array<i32: 1>} : vector<1x256xi32>
    %c128_i32 = arith.constant 128 : i32
    %9 = vector.broadcast %c128_i32 : i32 to vector<1x256xi32>
    %10 = arith.cmpi sge, %8, %9 : vector<1x256xi32>
    %c192_i32 = arith.constant 192 : i32
    %11 = vector.broadcast %c192_i32 : i32 to vector<1x256xi32>
    %12 = arith.cmpi slt, %8, %11 : vector<1x256xi32>
    %13 = arith.andi %10, %12 : vector<1x256xi1>
    %cst_7 = arith.constant 2.000000e+00 : f32
    %cst_8 = arith.constant 1.000000e+00 : f32
    %14 = vector.broadcast %cst_7 : f32 to vector<1x256xf32>
    %15 = vector.broadcast %cst_8 : f32 to vector<1x256xf32>
    %16 = arith.select %13, %14, %15 : vector<1x256xi1>, vector<1x256xf32>
    %17 = tpu.iota {dimensions = array<i32: 1>} : vector<1x64xi32>
    %c32_i32 = arith.constant 32 : i32
    %18 = vector.broadcast %c32_i32 : i32 to vector<1x64xi32>
    %19 = arith.cmpi slt, %17, %18 : vector<1x64xi32>
    %20 = arith.extui %19 : vector<1x64xi1> to vector<1x64xi32>
    %21 = arith.sitofp %20 : vector<1x64xi32> to vector<1x64xf32>
    %c0_9 = arith.constant 0 : index
    %c0_10 = arith.constant 0 : index
    %22 = vector.load %arg3[%c0_9, %c0_10] : memref<72x256xf32, #tpu.memory_space<vmem>>, vector<8x256xf32>
    %cst_11 = arith.constant 0.000000e+00 : f32
    %23 = vector.broadcast %cst_11 : f32 to vector<8x64xf32>
    %24 = vector.broadcast %16 : vector<1x256xf32> to vector<8x256xf32>
    %25 = arith.mulf %22, %24 : vector<8x256xf32>
    %26 = arith.negf %25 : vector<8x256xf32>
    %27 = math.exp %26 : vector<8x256xf32>
    %cst_12 = arith.constant 1.000000e+00 : f32
    %28 = vector.broadcast %cst_12 : f32 to vector<8x256xf32>
    %29 = arith.addf %28, %27 : vector<8x256xf32>
    %30 = arith.divf %28, %29 : vector<8x256xf32>
    %31 = vector.extract_strided_slice %30 {offsets = [0, 0], sizes = [8, 64], strides = [1, 1]} : vector<8x256xf32> to vector<8x64xf32>
    %32 = vector.extract_strided_slice %30 {offsets = [0, 64], sizes = [8, 64], strides = [1, 1]} : vector<8x256xf32> to vector<8x64xf32>
    %33 = vector.extract_strided_slice %30 {offsets = [0, 128], sizes = [8, 64], strides = [1, 1]} : vector<8x256xf32> to vector<8x64xf32>
    %cst_13 = arith.constant 2.000000e+00 : f32
    %34 = vector.broadcast %cst_13 : f32 to vector<8x64xf32>
    %35 = arith.mulf %34, %33 : vector<8x64xf32>
    %cst_14 = arith.constant 1.000000e+00 : f32
    %36 = vector.broadcast %cst_14 : f32 to vector<8x64xf32>
    %37 = arith.subf %35, %36 : vector<8x64xf32>
    %38 = vector.extract_strided_slice %30 {offsets = [0, 192], sizes = [8, 64], strides = [1, 1]} : vector<8x256xf32> to vector<8x64xf32>
    %39 = arith.mulf %32, %23 : vector<8x64xf32>
    %40 = arith.mulf %31, %37 : vector<8x64xf32>
    %41 = arith.addf %39, %40 : vector<8x64xf32>
    %42 = math.tanh %41 : vector<8x64xf32>
    %43 = arith.mulf %38, %42 : vector<8x64xf32>
    %44 = vector.broadcast %21 : vector<1x64xf32> to vector<8x64xf32>
    %45 = arith.mulf %43, %44 : vector<8x64xf32>
    %46 = vector.broadcast %21 : vector<1x64xf32> to vector<8x64xf32>
    %47 = arith.mulf %41, %46 : vector<8x64xf32>
    %cst_15 = arith.constant dense<0.000000e+00> : vector<8x256xf32>
    %48 = tpu.matmul %45, %7, %cst_15 {dimension_numbers = #tpu.dot_dimension_numbers<[1], [0], [0], [1], [0, 0, 1, 1], [], []>} : vector<8x64xf32>, vector<64x256xf32>, vector<8x256xf32> -> vector<8x256xf32>
    %c8 = arith.constant 8 : index
    %c0_16 = arith.constant 0 : index
    %49 = vector.load %arg3[%c8, %c0_16] : memref<72x256xf32, #tpu.memory_space<vmem>>, vector<8x256xf32>
    %50 = arith.addf %48, %49 : vector<8x256xf32>
    %51 = vector.broadcast %16 : vector<1x256xf32> to vector<8x256xf32>
    %52 = arith.mulf %50, %51 : vector<8x256xf32>
    %53 = arith.negf %52 : vector<8x256xf32>
    %54 = math.exp %53 : vector<8x256xf32>
    %cst_17 = arith.constant 1.000000e+00 : f32
    %55 = vector.broadcast %cst_17 : f32 to vector<8x256xf32>
    %56 = arith.addf %55, %54 : vector<8x256xf32>
    %57 = arith.divf %55, %56 : vector<8x256xf32>
    %58 = vector.extract_strided_slice %57 {offsets = [0, 0], sizes = [8, 64], strides = [1, 1]} : vector<8x256xf32> to vector<8x64xf32>
    %59 = vector.extract_strided_slice %57 {offsets = [0, 64], sizes = [8, 64], strides = [1, 1]} : vector<8x256xf32> to vector<8x64xf32>
    %60 = vector.extract_strided_slice %57 {offsets = [0, 128], sizes = [8, 64], strides = [1, 1]} : vector<8x256xf32> to vector<8x64xf32>
    %cst_18 = arith.constant 2.000000e+00 : f32
    %61 = vector.broadcast %cst_18 : f32 to vector<8x64xf32>
    %62 = arith.mulf %61, %60 : vector<8x64xf32>
    %cst_19 = arith.constant 1.000000e+00 : f32
    %63 = vector.broadcast %cst_19 : f32 to vector<8x64xf32>
    %64 = arith.subf %62, %63 : vector<8x64xf32>
    %65 = vector.extract_strided_slice %57 {offsets = [0, 192], sizes = [8, 64], strides = [1, 1]} : vector<8x256xf32> to vector<8x64xf32>
    %66 = arith.mulf %59, %47 : vector<8x64xf32>
    %67 = arith.mulf %58, %64 : vector<8x64xf32>
    %68 = arith.addf %66, %67 : vector<8x64xf32>
    %69 = math.tanh %68 : vector<8x64xf32>
    %70 = arith.mulf %65, %69 : vector<8x64xf32>
    %c0_20 = arith.constant 0 : index
    %c0_21 = arith.constant 0 : index
    %71 = vector.load %arg4[%c0_20, %c0_21] : memref<64x64xf32, #tpu.memory_space<vmem>>, vector<8x64xf32>
    tpu.vector_store %arg4[%c0_20, %c0_21], %70 {strides = array<i32>} : memref<64x64xf32, #tpu.memory_space<vmem>>, vector<8x64xf32>,
    %cst_22 = arith.constant dense<0.000000e+00> : vector<8x256xf32>
    %72 = tpu.matmul %70, %7, %cst_22 {dimension_numbers = #tpu.dot_dimension_numbers<[1], [0], [0], [1], [0, 0, 1, 1], [], []>} : vector<8x64xf32>, vector<64x256xf32>, vector<8x256xf32> -> vector<8x256xf32>
    %c16 = arith.constant 16 : index
    %c0_23 = arith.constant 0 : index
    %73 = vector.load %arg3[%c16, %c0_23] : memref<72x256xf32, #tpu.memory_space<vmem>>, vector<8x256xf32>
    %74 = arith.addf %72, %73 : vector<8x256xf32>
    %75 = vector.broadcast %16 : vector<1x256xf32> to vector<8x256xf32>
    %76 = arith.mulf %74, %75 : vector<8x256xf32>
    %77 = arith.negf %76 : vector<8x256xf32>
    %78 = math.exp %77 : vector<8x256xf32>
    %cst_24 = arith.constant 1.000000e+00 : f32
    %79 = vector.broadcast %cst_24 : f32 to vector<8x256xf32>
    %80 = arith.addf %79, %78 : vector<8x256xf32>
    %81 = arith.divf %79, %80 : vector<8x256xf32>
    %82 = vector.extract_strided_slice %81 {offsets = [0, 0], sizes = [8, 64], strides = [1, 1]} : vector<8x256xf32> to vector<8x64xf32>
    %83 = vector.extract_strided_slice %81 {offsets = [0, 64], sizes = [8, 64], strides = [1, 1]} : vector<8x256xf32> to vector<8x64xf32>
    %84 = vector.extract_strided_slice %81 {offsets = [0, 128], sizes = [8, 64], strides = [1, 1]} : vector<8x256xf32> to vector<8x64xf32>
    %cst_25 = arith.constant 2.000000e+00 : f32
    %85 = vector.broadcast %cst_25 : f32 to vector<8x64xf32>
    %86 = arith.mulf %85, %84 : vector<8x64xf32>
    %cst_26 = arith.constant 1.000000e+00 : f32
    %87 = vector.broadcast %cst_26 : f32 to vector<8x64xf32>
    %88 = arith.subf %86, %87 : vector<8x64xf32>
    %89 = vector.extract_strided_slice %81 {offsets = [0, 192], sizes = [8, 64], strides = [1, 1]} : vector<8x256xf32> to vector<8x64xf32>
    %90 = arith.mulf %83, %68 : vector<8x64xf32>
    %91 = arith.mulf %82, %88 : vector<8x64xf32>
    %92 = arith.addf %90, %91 : vector<8x64xf32>
    %93 = math.tanh %92 : vector<8x64xf32>
    %94 = arith.mulf %89, %93 : vector<8x64xf32>
    %c8_27 = arith.constant 8 : index
    %c0_28 = arith.constant 0 : index
    %95 = vector.load %arg4[%c8_27, %c0_28] : memref<64x64xf32, #tpu.memory_space<vmem>>, vector<8x64xf32>
    tpu.vector_store %arg4[%c8_27, %c0_28], %94 {strides = array<i32>} : memref<64x64xf32, #tpu.memory_space<vmem>>, vector<8x64xf32>,
    %cst_29 = arith.constant dense<0.000000e+00> : vector<8x256xf32>
    %96 = tpu.matmul %94, %7, %cst_29 {dimension_numbers = #tpu.dot_dimension_numbers<[1], [0], [0], [1], [0, 0, 1, 1], [], []>} : vector<8x64xf32>, vector<64x256xf32>, vector<8x256xf32> -> vector<8x256xf32>
    %c24 = arith.constant 24 : index
    %c0_30 = arith.constant 0 : index
    %97 = vector.load %arg3[%c24, %c0_30] : memref<72x256xf32, #tpu.memory_space<vmem>>, vector<8x256xf32>
    %98 = arith.addf %96, %97 : vector<8x256xf32>
    %99 = vector.broadcast %16 : vector<1x256xf32> to vector<8x256xf32>
    %100 = arith.mulf %98, %99 : vector<8x256xf32>
    %101 = arith.negf %100 : vector<8x256xf32>
    %102 = math.exp %101 : vector<8x256xf32>
    %cst_31 = arith.constant 1.000000e+00 : f32
    %103 = vector.broadcast %cst_31 : f32 to vector<8x256xf32>
    %104 = arith.addf %103, %102 : vector<8x256xf32>
    %105 = arith.divf %103, %104 : vector<8x256xf32>
    %106 = vector.extract_strided_slice %105 {offsets = [0, 0], sizes = [8, 64], strides = [1, 1]} : vector<8x256xf32> to vector<8x64xf32>
    %107 = vector.extract_strided_slice %105 {offsets = [0, 64], sizes = [8, 64], strides = [1, 1]} : vector<8x256xf32> to vector<8x64xf32>
    %108 = vector.extract_strided_slice %105 {offsets = [0, 128], sizes = [8, 64], strides = [1, 1]} : vector<8x256xf32> to vector<8x64xf32>
    %cst_32 = arith.constant 2.000000e+00 : f32
    %109 = vector.broadcast %cst_32 : f32 to vector<8x64xf32>
    %110 = arith.mulf %109, %108 : vector<8x64xf32>
    %cst_33 = arith.constant 1.000000e+00 : f32
    %111 = vector.broadcast %cst_33 : f32 to vector<8x64xf32>
    %112 = arith.subf %110, %111 : vector<8x64xf32>
    %113 = vector.extract_strided_slice %105 {offsets = [0, 192], sizes = [8, 64], strides = [1, 1]} : vector<8x256xf32> to vector<8x64xf32>
    %114 = arith.mulf %107, %92 : vector<8x64xf32>
    %115 = arith.mulf %106, %112 : vector<8x64xf32>
    %116 = arith.addf %114, %115 : vector<8x64xf32>
    %117 = math.tanh %116 : vector<8x64xf32>
    %118 = arith.mulf %113, %117 : vector<8x64xf32>
    %c16_34 = arith.constant 16 : index
    %c0_35 = arith.constant 0 : index
    %119 = vector.load %arg4[%c16_34, %c0_35] : memref<64x64xf32, #tpu.memory_space<vmem>>, vector<8x64xf32>
    tpu.vector_store %arg4[%c16_34, %c0_35], %118 {strides = array<i32>} : memref<64x64xf32, #tpu.memory_space<vmem>>, vector<8x64xf32>,
    %cst_36 = arith.constant dense<0.000000e+00> : vector<8x256xf32>
    %120 = tpu.matmul %118, %7, %cst_36 {dimension_numbers = #tpu.dot_dimension_numbers<[1], [0], [0], [1], [0, 0, 1, 1], [], []>} : vector<8x64xf32>, vector<64x256xf32>, vector<8x256xf32> -> vector<8x256xf32>
    %c32 = arith.constant 32 : index
    %c0_37 = arith.constant 0 : index
    %121 = vector.load %arg3[%c32, %c0_37] : memref<72x256xf32, #tpu.memory_space<vmem>>, vector<8x256xf32>
    %122 = arith.addf %120, %121 : vector<8x256xf32>
    %123 = vector.broadcast %16 : vector<1x256xf32> to vector<8x256xf32>
    %124 = arith.mulf %122, %123 : vector<8x256xf32>
    %125 = arith.negf %124 : vector<8x256xf32>
    %126 = math.exp %125 : vector<8x256xf32>
    %cst_38 = arith.constant 1.000000e+00 : f32
    %127 = vector.broadcast %cst_38 : f32 to vector<8x256xf32>
    %128 = arith.addf %127, %126 : vector<8x256xf32>
    %129 = arith.divf %127, %128 : vector<8x256xf32>
    %130 = vector.extract_strided_slice %129 {offsets = [0, 0], sizes = [8, 64], strides = [1, 1]} : vector<8x256xf32> to vector<8x64xf32>
    %131 = vector.extract_strided_slice %129 {offsets = [0, 64], sizes = [8, 64], strides = [1, 1]} : vector<8x256xf32> to vector<8x64xf32>
    %132 = vector.extract_strided_slice %129 {offsets = [0, 128], sizes = [8, 64], strides = [1, 1]} : vector<8x256xf32> to vector<8x64xf32>
    %cst_39 = arith.constant 2.000000e+00 : f32
    %133 = vector.broadcast %cst_39 : f32 to vector<8x64xf32>
    %134 = arith.mulf %133, %132 : vector<8x64xf32>
    %cst_40 = arith.constant 1.000000e+00 : f32
    %135 = vector.broadcast %cst_40 : f32 to vector<8x64xf32>
    %136 = arith.subf %134, %135 : vector<8x64xf32>
    %137 = vector.extract_strided_slice %129 {offsets = [0, 192], sizes = [8, 64], strides = [1, 1]} : vector<8x256xf32> to vector<8x64xf32>
    %138 = arith.mulf %131, %116 : vector<8x64xf32>
    %139 = arith.mulf %130, %136 : vector<8x64xf32>
    %140 = arith.addf %138, %139 : vector<8x64xf32>
    %141 = math.tanh %140 : vector<8x64xf32>
    %142 = arith.mulf %137, %141 : vector<8x64xf32>
    %c24_41 = arith.constant 24 : index
    %c0_42 = arith.constant 0 : index
    %143 = vector.load %arg4[%c24_41, %c0_42] : memref<64x64xf32, #tpu.memory_space<vmem>>, vector<8x64xf32>
    tpu.vector_store %arg4[%c24_41, %c0_42], %142 {strides = array<i32>} : memref<64x64xf32, #tpu.memory_space<vmem>>, vector<8x64xf32>,
    %cst_43 = arith.constant dense<0.000000e+00> : vector<8x256xf32>
    %144 = tpu.matmul %142, %7, %cst_43 {dimension_numbers = #tpu.dot_dimension_numbers<[1], [0], [0], [1], [0, 0, 1, 1], [], []>} : vector<8x64xf32>, vector<64x256xf32>, vector<8x256xf32> -> vector<8x256xf32>
    %c40 = arith.constant 40 : index
    %c0_44 = arith.constant 0 : index
    %145 = vector.load %arg3[%c40, %c0_44] : memref<72x256xf32, #tpu.memory_space<vmem>>, vector<8x256xf32>
    %146 = arith.addf %144, %145 : vector<8x256xf32>
    %147 = vector.broadcast %16 : vector<1x256xf32> to vector<8x256xf32>
    %148 = arith.mulf %146, %147 : vector<8x256xf32>
    %149 = arith.negf %148 : vector<8x256xf32>
    %150 = math.exp %149 : vector<8x256xf32>
    %cst_45 = arith.constant 1.000000e+00 : f32
    %151 = vector.broadcast %cst_45 : f32 to vector<8x256xf32>
    %152 = arith.addf %151, %150 : vector<8x256xf32>
    %153 = arith.divf %151, %152 : vector<8x256xf32>
    %154 = vector.extract_strided_slice %153 {offsets = [0, 0], sizes = [8, 64], strides = [1, 1]} : vector<8x256xf32> to vector<8x64xf32>
    %155 = vector.extract_strided_slice %153 {offsets = [0, 64], sizes = [8, 64], strides = [1, 1]} : vector<8x256xf32> to vector<8x64xf32>
    %156 = vector.extract_strided_slice %153 {offsets = [0, 128], sizes = [8, 64], strides = [1, 1]} : vector<8x256xf32> to vector<8x64xf32>
    %cst_46 = arith.constant 2.000000e+00 : f32
    %157 = vector.broadcast %cst_46 : f32 to vector<8x64xf32>
    %158 = arith.mulf %157, %156 : vector<8x64xf32>
    %cst_47 = arith.constant 1.000000e+00 : f32
    %159 = vector.broadcast %cst_47 : f32 to vector<8x64xf32>
    %160 = arith.subf %158, %159 : vector<8x64xf32>
    %161 = vector.extract_strided_slice %153 {offsets = [0, 192], sizes = [8, 64], strides = [1, 1]} : vector<8x256xf32> to vector<8x64xf32>
    %162 = arith.mulf %155, %140 : vector<8x64xf32>
    %163 = arith.mulf %154, %160 : vector<8x64xf32>
    %164 = arith.addf %162, %163 : vector<8x64xf32>
    %165 = math.tanh %164 : vector<8x64xf32>
    %166 = arith.mulf %161, %165 : vector<8x64xf32>
    %c32_48 = arith.constant 32 : index
    %c0_49 = arith.constant 0 : index
    %167 = vector.load %arg4[%c32_48, %c0_49] : memref<64x64xf32, #tpu.memory_space<vmem>>, vector<8x64xf32>
    tpu.vector_store %arg4[%c32_48, %c0_49], %166 {strides = array<i32>} : memref<64x64xf32, #tpu.memory_space<vmem>>, vector<8x64xf32>,
    %cst_50 = arith.constant dense<0.000000e+00> : vector<8x256xf32>
    %168 = tpu.matmul %166, %7, %cst_50 {dimension_numbers = #tpu.dot_dimension_numbers<[1], [0], [0], [1], [0, 0, 1, 1], [], []>} : vector<8x64xf32>, vector<64x256xf32>, vector<8x256xf32> -> vector<8x256xf32>
    %c48 = arith.constant 48 : index
    %c0_51 = arith.constant 0 : index
    %169 = vector.load %arg3[%c48, %c0_51] : memref<72x256xf32, #tpu.memory_space<vmem>>, vector<8x256xf32>
    %170 = arith.addf %168, %169 : vector<8x256xf32>
    %171 = vector.broadcast %16 : vector<1x256xf32> to vector<8x256xf32>
    %172 = arith.mulf %170, %171 : vector<8x256xf32>
    %173 = arith.negf %172 : vector<8x256xf32>
    %174 = math.exp %173 : vector<8x256xf32>
    %cst_52 = arith.constant 1.000000e+00 : f32
    %175 = vector.broadcast %cst_52 : f32 to vector<8x256xf32>
    %176 = arith.addf %175, %174 : vector<8x256xf32>
    %177 = arith.divf %175, %176 : vector<8x256xf32>
    %178 = vector.extract_strided_slice %177 {offsets = [0, 0], sizes = [8, 64], strides = [1, 1]} : vector<8x256xf32> to vector<8x64xf32>
    %179 = vector.extract_strided_slice %177 {offsets = [0, 64], sizes = [8, 64], strides = [1, 1]} : vector<8x256xf32> to vector<8x64xf32>
    %180 = vector.extract_strided_slice %177 {offsets = [0, 128], sizes = [8, 64], strides = [1, 1]} : vector<8x256xf32> to vector<8x64xf32>
    %cst_53 = arith.constant 2.000000e+00 : f32
    %181 = vector.broadcast %cst_53 : f32 to vector<8x64xf32>
    %182 = arith.mulf %181, %180 : vector<8x64xf32>
    %cst_54 = arith.constant 1.000000e+00 : f32
    %183 = vector.broadcast %cst_54 : f32 to vector<8x64xf32>
    %184 = arith.subf %182, %183 : vector<8x64xf32>
    %185 = vector.extract_strided_slice %177 {offsets = [0, 192], sizes = [8, 64], strides = [1, 1]} : vector<8x256xf32> to vector<8x64xf32>
    %186 = arith.mulf %179, %164 : vector<8x64xf32>
    %187 = arith.mulf %178, %184 : vector<8x64xf32>
    %188 = arith.addf %186, %187 : vector<8x64xf32>
    %189 = math.tanh %188 : vector<8x64xf32>
    %190 = arith.mulf %185, %189 : vector<8x64xf32>
    %c40_55 = arith.constant 40 : index
    %c0_56 = arith.constant 0 : index
    %191 = vector.load %arg4[%c40_55, %c0_56] : memref<64x64xf32, #tpu.memory_space<vmem>>, vector<8x64xf32>
    tpu.vector_store %arg4[%c40_55, %c0_56], %190 {strides = array<i32>} : memref<64x64xf32, #tpu.memory_space<vmem>>, vector<8x64xf32>,
    %cst_57 = arith.constant dense<0.000000e+00> : vector<8x256xf32>
    %192 = tpu.matmul %190, %7, %cst_57 {dimension_numbers = #tpu.dot_dimension_numbers<[1], [0], [0], [1], [0, 0, 1, 1], [], []>} : vector<8x64xf32>, vector<64x256xf32>, vector<8x256xf32> -> vector<8x256xf32>
    %c56 = arith.constant 56 : index
    %c0_58 = arith.constant 0 : index
    %193 = vector.load %arg3[%c56, %c0_58] : memref<72x256xf32, #tpu.memory_space<vmem>>, vector<8x256xf32>
    %194 = arith.addf %192, %193 : vector<8x256xf32>
    %195 = vector.broadcast %16 : vector<1x256xf32> to vector<8x256xf32>
    %196 = arith.mulf %194, %195 : vector<8x256xf32>
    %197 = arith.negf %196 : vector<8x256xf32>
    %198 = math.exp %197 : vector<8x256xf32>
    %cst_59 = arith.constant 1.000000e+00 : f32
    %199 = vector.broadcast %cst_59 : f32 to vector<8x256xf32>
    %200 = arith.addf %199, %198 : vector<8x256xf32>
    %201 = arith.divf %199, %200 : vector<8x256xf32>
    %202 = vector.extract_strided_slice %201 {offsets = [0, 0], sizes = [8, 64], strides = [1, 1]} : vector<8x256xf32> to vector<8x64xf32>
    %203 = vector.extract_strided_slice %201 {offsets = [0, 64], sizes = [8, 64], strides = [1, 1]} : vector<8x256xf32> to vector<8x64xf32>
    %204 = vector.extract_strided_slice %201 {offsets = [0, 128], sizes = [8, 64], strides = [1, 1]} : vector<8x256xf32> to vector<8x64xf32>
    %cst_60 = arith.constant 2.000000e+00 : f32
    %205 = vector.broadcast %cst_60 : f32 to vector<8x64xf32>
    %206 = arith.mulf %205, %204 : vector<8x64xf32>
    %cst_61 = arith.constant 1.000000e+00 : f32
    %207 = vector.broadcast %cst_61 : f32 to vector<8x64xf32>
    %208 = arith.subf %206, %207 : vector<8x64xf32>
    %209 = vector.extract_strided_slice %201 {offsets = [0, 192], sizes = [8, 64], strides = [1, 1]} : vector<8x256xf32> to vector<8x64xf32>
    %210 = arith.mulf %203, %188 : vector<8x64xf32>
    %211 = arith.mulf %202, %208 : vector<8x64xf32>
    %212 = arith.addf %210, %211 : vector<8x64xf32>
    %213 = math.tanh %212 : vector<8x64xf32>
    %214 = arith.mulf %209, %213 : vector<8x64xf32>
    %c48_62 = arith.constant 48 : index
    %c0_63 = arith.constant 0 : index
    %215 = vector.load %arg4[%c48_62, %c0_63] : memref<64x64xf32, #tpu.memory_space<vmem>>, vector<8x64xf32>
    tpu.vector_store %arg4[%c48_62, %c0_63], %214 {strides = array<i32>} : memref<64x64xf32, #tpu.memory_space<vmem>>, vector<8x64xf32>,
    %cst_64 = arith.constant dense<0.000000e+00> : vector<8x256xf32>
    %216 = tpu.matmul %214, %7, %cst_64 {dimension_numbers = #tpu.dot_dimension_numbers<[1], [0], [0], [1], [0, 0, 1, 1], [], []>} : vector<8x64xf32>, vector<64x256xf32>, vector<8x256xf32> -> vector<8x256xf32>
    %c64 = arith.constant 64 : index
    %c0_65 = arith.constant 0 : index
    %217 = vector.load %arg3[%c64, %c0_65] : memref<72x256xf32, #tpu.memory_space<vmem>>, vector<8x256xf32>
    %218 = arith.addf %216, %217 : vector<8x256xf32>
    %219 = vector.broadcast %16 : vector<1x256xf32> to vector<8x256xf32>
    %220 = arith.mulf %218, %219 : vector<8x256xf32>
    %221 = arith.negf %220 : vector<8x256xf32>
    %222 = math.exp %221 : vector<8x256xf32>
    %cst_66 = arith.constant 1.000000e+00 : f32
    %223 = vector.broadcast %cst_66 : f32 to vector<8x256xf32>
    %224 = arith.addf %223, %222 : vector<8x256xf32>
    %225 = arith.divf %223, %224 : vector<8x256xf32>
    %226 = vector.extract_strided_slice %225 {offsets = [0, 0], sizes = [8, 64], strides = [1, 1]} : vector<8x256xf32> to vector<8x64xf32>
    %227 = vector.extract_strided_slice %225 {offsets = [0, 64], sizes = [8, 64], strides = [1, 1]} : vector<8x256xf32> to vector<8x64xf32>
    %228 = vector.extract_strided_slice %225 {offsets = [0, 128], sizes = [8, 64], strides = [1, 1]} : vector<8x256xf32> to vector<8x64xf32>
    %cst_67 = arith.constant 2.000000e+00 : f32
    %229 = vector.broadcast %cst_67 : f32 to vector<8x64xf32>
    %230 = arith.mulf %229, %228 : vector<8x64xf32>
    %cst_68 = arith.constant 1.000000e+00 : f32
    %231 = vector.broadcast %cst_68 : f32 to vector<8x64xf32>
    %232 = arith.subf %230, %231 : vector<8x64xf32>
    %233 = vector.extract_strided_slice %225 {offsets = [0, 192], sizes = [8, 64], strides = [1, 1]} : vector<8x256xf32> to vector<8x64xf32>
    %234 = arith.mulf %227, %212 : vector<8x64xf32>
    %235 = arith.mulf %226, %232 : vector<8x64xf32>
    %236 = arith.addf %234, %235 : vector<8x64xf32>
    %237 = math.tanh %236 : vector<8x64xf32>
    %238 = arith.mulf %233, %237 : vector<8x64xf32>
    %c56_69 = arith.constant 56 : index
    %c0_70 = arith.constant 0 : index
    %239 = vector.load %arg4[%c56_69, %c0_70] : memref<64x64xf32, #tpu.memory_space<vmem>>, vector<8x64xf32>
    tpu.vector_store %arg4[%c56_69, %c0_70], %238 {strides = array<i32>} : memref<64x64xf32, #tpu.memory_space<vmem>>, vector<8x64xf32>,
    %c0_71 = arith.constant 0 : index
    %c0_72 = arith.constant 0 : index
    %240 = vector.load %arg4[%c0_71, %c0_72] : memref<64x64xf32, #tpu.memory_space<vmem>>, vector<64x64xf32>
    %c200 = arith.constant 200 : index
    %c0_73 = arith.constant 0 : index
    %241 = vector.load %arg1[%c200, %c0_73] : memref<272x256xf32, #tpu.memory_space<vmem>>, vector<64x128xf32>
    %cst_74 = arith.constant dense<0.000000e+00> : vector<64x128xf32>
    %242 = tpu.matmul %240, %241, %cst_74 {dimension_numbers = #tpu.dot_dimension_numbers<[1], [0], [0], [1], [0, 0, 1, 1], [], []>} : vector<64x64xf32>, vector<64x128xf32>, vector<64x128xf32> -> vector<64x128xf32>
    %c264 = arith.constant 264 : index
    %c0_75 = arith.constant 0 : index
    %243 = vector.load %arg1[%c264, %c0_75] : memref<272x256xf32, #tpu.memory_space<vmem>>, vector<1x128xf32>
    %244 = vector.broadcast %243 : vector<1x128xf32> to vector<64x128xf32>
    %245 = arith.addf %242, %244 : vector<64x128xf32>
    %c0_76 = arith.constant 0 : index
    %c0_77 = arith.constant 0 : index
    %246 = vector.load %arg2[%c0_76, %c0_77] : memref<64x128xf32, #tpu.memory_space<vmem>>, vector<64x128xf32>
    tpu.vector_store %arg2[%c0_76, %c0_77], %245 {strides = array<i32>} : memref<64x128xf32, #tpu.memory_space<vmem>>, vector<64x128xf32>,
    return
  }
}

</mosaic_0001>

<llo_original>
// kernel: tpu_custom_call.1
$region0: #{tpu_custom_call.1}
  #allocation0 [shape = 'u32[]', space=smem, size = 0x4, offset = 0x4, fixed_abs, tag = 'smem constant byte address 0x4 - core index']
  #allocation1 [shape = 'u32[144,128]{1,0:T(1,128)}', space=vmem, size = 0x12000, scoped, tag = 'internal scratch']
  #allocation2 [shape = 'f32[72,256]{1,0:T(8,128)}', space=vmem, size = 0x12000, scoped, tag = 'scratch operand']
  #allocation3 [shape = 'f32[64,64]{1,0:T(8,128)}', space=vmem, size = 0x8000, scoped, tag = 'scratch operand']
  %s0 = inlined_call_operand.hbm [shape: f32[72,128], index: 0, kind: input, shape index: {}]
  %s1 = inlined_call_operand.hbm [shape: f32[272,256], index: 1, kind: input, shape index: {}]
  %s2 = inlined_call_operand.hbm [shape: f32[64,128], index: 2, kind: output, shape index: {}]
  %s3 = sld [smem:[#allocation0]]
  $region26: #{tpu_custom_call.1} parent=0
    _
  %s5 = ssub.s32 1, %s3
  %s6 = scalar_select 0, %s5, %s3
  $region1: #{tpu_custom_call.1} parent=0
    #allocation4 [shape = 'u8[36864]{0}', space=vmem, size = 0x9000, scoped, tag = 'input window, operand 0, single buffered']
    #allocation5 [shape = 's32[1]{0}', space=sflag, size = 0x4, scoped, tag = 'scoped memory for tpu_custom_call.1']
    #allocation6 [shape = 's32[1]{0}', space=sflag, size = 0x4, scoped, tag = 'scoped memory for tpu_custom_call.1']
    #allocation7 [shape = 'u8[278528]{0}', space=vmem, size = 0x44000, scoped, tag = 'input window, operand 1, single buffered']
    #allocation8 [shape = 's32[1]{0}', space=sflag, size = 0x4, scoped, tag = 'scoped memory for tpu_custom_call.1']
    #allocation9 [shape = 'u8[32768]{0}', space=vmem, size = 0x8000, scoped, tag = 'output window, operand 0, single buffered']
    %7 = vsyncpa [#allocation5], 0
    %8 = vsyncpa [#allocation8], 0
    %9 = vsyncpa [#allocation6], 0
    // Predicated region
    $region2: #{tpu_custom_call.1} parent=1 // pred_check
      _
    $region3: #{tpu_custom_call.1} parent=1 // pred_check_branch
      %11 = sbr.rel (0) target = $region5
    $region4: #{tpu_custom_call.1} parent=1 // pred_region
      %s13 = ssub.s32 1152, 1152
      %14 = vsyncadd [#allocation5], %s13
      %s15 = sshll.u32 [#allocation4], 4
      %s16 = int_to_ptr.vmem [resolvable:$true] %s15
      %21 = dma.hbm_to_vmem [thread:$0]  %s0, 1152, %s16, [#allocation5], 128, 128, 8
    $region5: #{tpu_custom_call.1} parent=1 // pred_fallthru
      _
    // Predicated region
    $region6: #{tpu_custom_call.1} parent=1 // pred_check
      _
    $region7: #{tpu_custom_call.1} parent=1 // pred_check_branch
      %23 = sbr.rel (0) target = $region9
    $region8: #{tpu_custom_call.1} parent=1 // pred_region
      %s25 = ssub.s32 8704, 8704
      %26 = vsyncadd [#allocation8], %s25
      %s27 = sshll.u32 [#allocation7], 4
      %s28 = int_to_ptr.vmem [resolvable:$true] %s27
      %33 = dma.hbm_to_vmem [thread:$0]  %s1, 8704, %s28, [#allocation8], 256, 256, 16
    $region9: #{tpu_custom_call.1} parent=1 // pred_fallthru
      _
    // Predicated region
    $region10: #{tpu_custom_call.1} parent=1 // pred_check
      _
    $region11: #{tpu_custom_call.1} parent=1 // pred_check_branch
      %35 = sbr.rel (0) target = $region13
    $region12: #{tpu_custom_call.1} parent=1 // pred_region
      %36 = dma.done [#allocation5], 1152
    $region13: #{tpu_custom_call.1} parent=1 // pred_fallthru
      _
    // Predicated region
    $region14: #{tpu_custom_call.1} parent=1 // pred_check
      _
    $region15: #{tpu_custom_call.1} parent=1 // pred_check_branch
      %38 = sbr.rel (0) target = $region17
    $region16: #{tpu_custom_call.1} parent=1 // pred_region
      %39 = dma.done [#allocation8], 8704
    $region17: #{tpu_custom_call.1} parent=1 // pred_fallthru
      _
    %v40 = vld [vmem:[#allocation4] sm:$0xff]
    %v41 = vld [vmem:[#allocation4 + $0x8] sm:$0xff]
    %v42 = vld [vmem:[#allocation4 + $0x10] sm:$0xff]
    %v43 = vld [vmem:[#allocation4 + $0x18] sm:$0xff]
    %v44 = vld [vmem:[#allocation4 + $0x20] sm:$0xff]
    %v45 = vld [vmem:[#allocation4 + $0x28] sm:$0xff]
    %v46 = vld [vmem:[#allocation4 + $0x30] sm:$0xff]
    %v47 = vld [vmem:[#allocation4 + $0x38] sm:$0xff]
    %v48 = vld [vmem:[#allocation4 + $0x40] sm:$0xff]
    %v49 = vld [vmem:[#allocation7] sm:$0xff]
    %v50 = vld [vmem:[#allocation7 + $0x8] sm:$0xff]
    %v51 = vld [vmem:[#allocation7 + $0x10] sm:$0xff]
    %v52 = vld [vmem:[#allocation7 + $0x18] sm:$0xff]
    %v53 = vld [vmem:[#allocation7 + $0x20] sm:$0xff]
    %v54 = vld [vmem:[#allocation7 + $0x28] sm:$0xff]
    %v55 = vld [vmem:[#allocation7 + $0x30] sm:$0xff]
    %v56 = vld [vmem:[#allocation7 + $0x38] sm:$0xff]
    %v57 = vld [vmem:[#allocation7 + $0x40] sm:$0xff]
    %v58 = vld [vmem:[#allocation7 + $0x48] sm:$0xff]
    %v59 = vld [vmem:[#allocation7 + $0x50] sm:$0xff]
    %v60 = vld [vmem:[#allocation7 + $0x58] sm:$0xff]
    %v61 = vld [vmem:[#allocation7 + $0x60] sm:$0xff]
    %v62 = vld [vmem:[#allocation7 + $0x68] sm:$0xff]
    %v63 = vld [vmem:[#allocation7 + $0x70] sm:$0xff]
    %v64 = vld [vmem:[#allocation7 + $0x78] sm:$0xff]
    %v65 = vld [vmem:[#allocation7 + $0x80] sm:$0xff]
    %v66 = vld [vmem:[#allocation7 + $0x88] sm:$0xff]
    %v67 = vld [vmem:[#allocation7 + $0x90] sm:$0xff]
    %v68 = vld [vmem:[#allocation7 + $0x98] sm:$0xff]
    %v69 = vld [vmem:[#allocation7 + $0xa0] sm:$0xff]
    %v70 = vld [vmem:[#allocation7 + $0xa8] sm:$0xff]
    %v71 = vld [vmem:[#allocation7 + $0xb0] sm:$0xff]
    %v72 = vld [vmem:[#allocation7 + $0xb8] sm:$0xff]
    %v73 = vld [vmem:[#allocation7 + $0xc0] sm:$0xff]
    %v74 = vld [vmem:[#allocation7 + $0xc8] sm:$0xff]
    %v75 = vld [vmem:[#allocation7 + $0xd0] sm:$0xff]
    %v76 = vld [vmem:[#allocation7 + $0xd8] sm:$0xff]
    %v77 = vld [vmem:[#allocation7 + $0xe0] sm:$0xff]
    %v78 = vld [vmem:[#allocation7 + $0xe8] sm:$0xff]
    %v79 = vld [vmem:[#allocation7 + $0xf0] sm:$0xff]
    %v80 = vld [vmem:[#allocation7 + $0xf8] sm:$0xff]
    %s81 = scalar_lea.vmem [#allocation7], 256
    %v82 = vld [vmem:[%s81] ss:$8 sm:$0x3]
    %v84 = vlaneseq
    %v85 = vshrl.u32 %v84, 7
    %v86 = vsub.s32 0, %v85
    %v87 = vrot.slane %v82, %v86
    %v88 = vlaneseq
    %v89 = vshrl.u32 %v88, 7
    %v90 = vsub.s32 1, %v89
    %v91 = vrot.slane %v82, %v90
    %94 = vmatprep.subr.mxu0 %v50
    %95 = vmatpush1.msra.mxu0 %v49
    %96 = vmatprep.subr.mxu0 %v52
    %97 = vmatpush1.msra.mxu0 %v51
    %98 = vmatprep.subr.mxu0 %v54
    %99 = vmatpush1.msra.mxu0 %v53
    %100 = vmatprep.subr.mxu0 %v56
    %101 = vmatpush1.msra.mxu0 %v55
    %102 = vmatprep.subr.mxu0 %v58
    %103 = vmatpush1.msra.mxu0 %v57
    %104 = vmatprep.subr.mxu0 %v60
    %105 = vmatpush1.msra.mxu0 %v59
    %106 = vmatprep.subr.mxu0 %v62
    %107 = vmatpush1.msra.mxu0 %v61
    %108 = vmatprep.subr.mxu0 %v64
    %109 = vmatpush1.msra.mxu0 %v63
    %110 = vmatprep.subr.mxu0 %v66
    %111 = vmatpush1.msra.mxu0 %v65
    %112 = vmatprep.subr.mxu0 %v68
    %113 = vmatpush1.msra.mxu0 %v67
    %114 = vmatprep.subr.mxu0 %v70
    %115 = vmatpush1.msra.mxu0 %v69
    %116 = vmatprep.subr.mxu0 %v72
    %117 = vmatpush1.msra.mxu0 %v71
    %118 = vmatprep.subr.mxu0 %v74
    %119 = vmatpush1.msra.mxu0 %v73
    %120 = vmatprep.subr.mxu0 %v76
    %121 = vmatpush1.msra.mxu0 %v75
    %122 = vmatprep.subr.mxu0 %v78
    %123 = vmatpush1.msra.mxu0 %v77
    %124 = vmatprep.subr.mxu0 %v80
    %125 = vmatpush1.msra.mxu0 %v79
    %126 = vmatprep.subr.mxu0 0.0
    %127 = vmatpush1.msra.mxu0 0.0
    %128 = vmatprep.subr.mxu0 0.0
    %129 = vmatpush1.msra.mxu0 0.0
    %130 = vmatprep.subr.mxu0 0.0
    %131 = vmatpush1.msra.mxu0 0.0
    %132 = vmatprep.subr.mxu0 0.0
    %133 = vmatpush1.msra.mxu0 0.0
    %134 = vmatprep.subr.mxu0 0.0
    %135 = vmatpush1.msra.mxu0 0.0
    %136 = vmatprep.subr.mxu0 0.0
    %137 = vmatpush1.msra.mxu0 0.0
    %138 = vmatprep.subr.mxu0 0.0
    %139 = vmatpush1.msra.mxu0 0.0
    %140 = vmatprep.subr.mxu0 0.0
    %141 = vmatpush1.msra.mxu0 0.0
    %142 = vmatprep.subr.mxu0 0.0
    %143 = vmatpush1.msra.mxu0 0.0
    %144 = vmatprep.subr.mxu0 0.0
    %145 = vmatpush1.msra.mxu0 0.0
    %146 = vmatprep.subr.mxu0 0.0
    %147 = vmatpush1.msra.mxu0 0.0
    %148 = vmatprep.subr.mxu0 0.0
    %149 = vmatpush1.msra.mxu0 0.0
    %150 = vmatprep.subr.mxu0 0.0
    %151 = vmatpush1.msra.mxu0 0.0
    %152 = vmatprep.subr.mxu0 0.0
    %153 = vmatpush1.msra.mxu0 0.0
    %154 = vmatprep.subr.mxu0 0.0
    %155 = vmatpush1.msra.mxu0 0.0
    %156 = vmatprep.subr.mxu0 0.0
    %157 = vmatpush1.msra.mxu0 0.0
    %158 = vmatprep.mubr.f32.mxu0 0.0
    %159 = vmatmul.mubr.f32.gmra.mrb[0].mxu0 %v40
    %v160 = vpop.f32.mrb[0].mxu0
    %v161 = vadd.f32 %v87, %v160
    %v162 = vpop.f32.mrb[0].mxu0
    %v163 = vadd.f32 %v91, %v162
    %164 = vmatprep.mubr.f32.mxu0 0.0
    %165 = vmatmul.mubr.f32.gmra.mrb[0].mxu0 %v41
    %v166 = vpop.f32.mrb[0].mxu0
    %v167 = vadd.f32 %v87, %v166
    %v168 = vpop.f32.mrb[0].mxu0
    %v169 = vadd.f32 %v91, %v168
    %170 = vmatprep.mubr.f32.mxu0 0.0
    %171 = vmatmul.mubr.f32.gmra.mrb[0].mxu0 %v42
    %v172 = vpop.f32.mrb[0].mxu0
    %v173 = vadd.f32 %v87, %v172
    %v174 = vpop.f32.mrb[0].mxu0
    %v175 = vadd.f32 %v91, %v174
    %176 = vmatprep.mubr.f32.mxu0 0.0
    %177 = vmatmul.mubr.f32.gmra.mrb[0].mxu0 %v43
    %v178 = vpop.f32.mrb[0].mxu0
    %v179 = vadd.f32 %v87, %v178
    %v180 = vpop.f32.mrb[0].mxu0
    %v181 = vadd.f32 %v91, %v180
    %182 = vmatprep.mubr.f32.mxu0 0.0
    %183 = vmatmul.mubr.f32.gmra.mrb[0].mxu0 %v44
    %v184 = vpop.f32.mrb[0].mxu0
    %v185 = vadd.f32 %v87, %v184
    %v186 = vpop.f32.mrb[0].mxu0
    %v187 = vadd.f32 %v91, %v186
    %188 = vmatprep.mubr.f32.mxu0 0.0
    %189 = vmatmul.mubr.f32.gmra.mrb[0].mxu0 %v45
    %v190 = vpop.f32.mrb[0].mxu0
    %v191 = vadd.f32 %v87, %v190
    %v192 = vpop.f32.mrb[0].mxu0
    %v193 = vadd.f32 %v91, %v192
    %194 = vmatprep.mubr.f32.mxu0 0.0
    %195 = vmatmul.mubr.f32.gmra.mrb[0].mxu0 %v46
    %v196 = vpop.f32.mrb[0].mxu0
    %v197 = vadd.f32 %v87, %v196
    %v198 = vpop.f32.mrb[0].mxu0
    %v199 = vadd.f32 %v91, %v198
    %200 = vmatprep.mubr.f32.mxu0 0.0
    %201 = vmatmul.mubr.f32.gmra.mrb[0].mxu0 %v47
    %v202 = vpop.f32.mrb[0].mxu0
    %v203 = vadd.f32 %v87, %v202
    %v204 = vpop.f32.mrb[0].mxu0
    %v205 = vadd.f32 %v91, %v204
    %206 = vmatprep.mubr.f32.mxu0 0.0
    %207 = vmatmul.mubr.f32.gmra.mrb[0].mxu0 %v48
    %v208 = vpop.f32.mrb[0].mxu0
    %v209 = vadd.f32 %v87, %v208
    %v210 = vpop.f32.mrb[0].mxu0
    %v211 = vadd.f32 %v91, %v210
    %212 = vdwg.mxu0
    %213 = vst [vmem:[#allocation2] sm:$0xff] %v161
    %214 = vst [vmem:[#allocation2 + $0x8] sm:$0xff] %v163
    %215 = vst [vmem:[#allocation2 + $0x10] sm:$0xff] %v167
    %216 = vst [vmem:[#allocation2 + $0x18] sm:$0xff] %v169
    %217 = vst [vmem:[#allocation2 + $0x20] sm:$0xff] %v173
    %218 = vst [vmem:[#allocation2 + $0x28] sm:$0xff] %v175
    %219 = vst [vmem:[#allocation2 + $0x30] sm:$0xff] %v179
    %220 = vst [vmem:[#allocation2 + $0x38] sm:$0xff] %v181
    %221 = vst [vmem:[#allocation2 + $0x40] sm:$0xff] %v185
    %222 = vst [vmem:[#allocation2 + $0x48] sm:$0xff] %v187
    %223 = vst [vmem:[#allocation2 + $0x50] sm:$0xff] %v191
    %224 = vst [vmem:[#allocation2 + $0x58] sm:$0xff] %v193
    %225 = vst [vmem:[#allocation2 + $0x60] sm:$0xff] %v197
    %226 = vst [vmem:[#allocation2 + $0x68] sm:$0xff] %v199
    %227 = vst [vmem:[#allocation2 + $0x70] sm:$0xff] %v203
    %228 = vst [vmem:[#allocation2 + $0x78] sm:$0xff] %v205
    %229 = vst [vmem:[#allocation2 + $0x80] sm:$0xff] %v209
    %230 = vst [vmem:[#allocation2 + $0x88] sm:$0xff] %v211
    %v231 = vld [vmem:[#allocation7 + $0x110] sm:$0xff]
    %v232 = vld [vmem:[#allocation7 + $0x118] sm:$0xff]
    %v233 = vld [vmem:[#allocation7 + $0x120] sm:$0xff]
    %v234 = vld [vmem:[#allocation7 + $0x128] sm:$0xff]
    %v235 = vld [vmem:[#allocation7 + $0x130] sm:$0xff]
    %v236 = vld [vmem:[#allocation7 + $0x138] sm:$0xff]
    %v237 = vld [vmem:[#allocation7 + $0x140] sm:$0xff]
    %v238 = vld [vmem:[#allocation7 + $0x148] sm:$0xff]
    %v239 = vld [vmem:[#allocation7 + $0x150] sm:$0xff]
    %v240 = vld [vmem:[#allocation7 + $0x158] sm:$0xff]
    %v241 = vld [vmem:[#allocation7 + $0x160] sm:$0xff]
    %v242 = vld [vmem:[#allocation7 + $0x168] sm:$0xff]
    %v243 = vld [vmem:[#allocation7 + $0x170] sm:$0xff]
    %v244 = vld [vmem:[#allocation7 + $0x178] sm:$0xff]
    %v245 = vld [vmem:[#allocation7 + $0x180] sm:$0xff]
    %v246 = vld [vmem:[#allocation7 + $0x188] sm:$0xff]
    %v247 = vlaneseq
    %v248 = vand.u32 %v247, 127
    %v249 = vadd.s32 %v248, 128
    %vm250 = vcmp.ge.s32.totalorder %v248, 128
    %vm251 = vcmp.ge.s32.totalorder %v249, 128
    %vm252 = vcmp.lt.s32.totalorder %v248, 192
    %vm253 = vcmp.lt.s32.totalorder %v249, 192
    %vm254 = vmand %vm250, %vm252
    %vm255 = vmand %vm251, %vm253
    %v256 = vsel %vm254, 2.0, 1.0
    %v257 = vsel %vm255, 2.0, 1.0
    %vm258 = vcmp.lt.s32.totalorder %v248, 32
    %v259 = vsel %vm258, 1, 0
    %v260 = vcvt.s32.f32 %v259
    %v261 = vld [vmem:[#allocation2] sm:$0xff]
    %v262 = vld [vmem:[#allocation2 + $0x8] sm:$0xff]
    %v263 = vmul.f32 %v261, %v256
    %v264 = vmul.f32 %v262, %v257
    %v265 = vxor.u32 %v263, 2147483648
    %v266 = vxor.u32 %v264, 2147483648
    %v267 = vmul.f32 %v265, 1.442695
    %v268 = vpow.pop %v267
    %v269 = vmul.f32 %v266, 1.442695
    %v270 = vpow.pop %v269
    %v271 = vadd.f32 %v268, 1.0
    %v272 = vadd.f32 %v270, 1.0
    %v273 = vrcp.pop %v271
    %v274 = vmul.f32 1.0, %v273
    %v275 = vrcp.pop %v272
    %v276 = vmul.f32 1.0, %v275
    %v277 = vmul.f32 %v276, 2.0
    %v278 = vsub.f32 %v277, 1.0
    %v279 = vmul.f32 %v274, 0.0
    %v280 = vmul.f32 %v274, %v278
    %282 = vrot.lane.b32.xlu0 %v280, 64
    %v283 = vpop.permute.xlu0 %282
    %v285 = vadd.f32 %v279, %v283
    %v286 = vtanh.pop %v285
    %v287 = vmul.f32 %v276, %v286
    %289 = vrot.lane.b32.xlu0 %v260, 64
    %v290 = vpop.permute.xlu0 %289
    %v292 = vmul.f32 %v287, %v290
    %v293 = vmul.f32 %v285, %v290
    %v294 = vld [vmem:[#allocation2 + $0x10] sm:$0xff]
    %v295 = vld [vmem:[#allocation2 + $0x18] sm:$0xff]
    %297 = vrot.lane.b32.xlu0 %v292, 64
    %v298 = vpop.permute.xlu0 %297
    %vm299 = vcmask 523264
    %v300 = vsel %vm299, %v298, 0
    %302 = vmatprep.subr.mxu0 %v232
    %303 = vmatpush1.msra.mxu0 %v231
    %304 = vmatprep.subr.mxu0 %v234
    %305 = vmatpush1.msra.mxu0 %v233
    %306 = vmatprep.subr.mxu0 %v236
    %307 = vmatpush1.msra.mxu0 %v235
    %308 = vmatprep.subr.mxu0 %v238
    %309 = vmatpush1.msra.mxu0 %v237
    %310 = vmatprep.subr.mxu0 %v240
    %311 = vmatpush1.msra.mxu0 %v239
    %312 = vmatprep.subr.mxu0 %v242
    %313 = vmatpush1.msra.mxu0 %v241
    %314 = vmatprep.subr.mxu0 %v244
    %315 = vmatpush1.msra.mxu0 %v243
    %316 = vmatprep.subr.mxu0 %v246
    %317 = vmatpush1.msra.mxu0 %v245
    %318 = vmatprep.subr.mxu0 0.0
    %319 = vmatpush1.msra.mxu0 0.0
    %320 = vmatprep.subr.mxu0 0.0
    %321 = vmatpush1.msra.mxu0 0.0
    %322 = vmatprep.subr.mxu0 0.0
    %323 = vmatpush1.msra.mxu0 0.0
    %324 = vmatprep.subr.mxu0 0.0
    %325 = vmatpush1.msra.mxu0 0.0
    %326 = vmatprep.subr.mxu0 0.0
    %327 = vmatpush1.msra.mxu0 0.0
    %328 = vmatprep.subr.mxu0 0.0
    %329 = vmatpush1.msra.mxu0 0.0
    %330 = vmatprep.subr.mxu0 0.0
    %331 = vmatpush1.msra.mxu0 0.0
    %332 = vmatprep.subr.mxu0 0.0
    %333 = vmatpush1.msra.mxu0 0.0
    %334 = vmatprep.subr.mxu0 0.0
    %335 = vmatpush1.msra.mxu0 0.0
    %336 = vmatprep.subr.mxu0 0.0
    %337 = vmatpush1.msra.mxu0 0.0
    %338 = vmatprep.subr.mxu0 0.0
    %339 = vmatpush1.msra.mxu0 0.0
    %340 = vmatprep.subr.mxu0 0.0
    %341 = vmatpush1.msra.mxu0 0.0
    %342 = vmatprep.subr.mxu0 0.0
    %343 = vmatpush1.msra.mxu0 0.0
    %344 = vmatprep.subr.mxu0 0.0
    %345 = vmatpush1.msra.mxu0 0.0
    %346 = vmatprep.subr.mxu0 0.0
    %347 = vmatpush1.msra.mxu0 0.0
    %348 = vmatprep.subr.mxu0 0.0
    %349 = vmatpush1.msra.mxu0 0.0
    %350 = vmatprep.subr.mxu0 0.0
    %351 = vmatpush1.msra.mxu0 0.0
    %352 = vmatprep.subr.mxu0 0.0
    %353 = vmatpush1.msra.mxu0 0.0
    %354 = vmatprep.subr.mxu0 0.0
    %355 = vmatpush1.msra.mxu0 0.0
    %356 = vmatprep.subr.mxu0 0.0
    %357 = vmatpush1.msra.mxu0 0.0
    %358 = vmatprep.subr.mxu0 0.0
    %359 = vmatpush1.msra.mxu0 0.0
    %360 = vmatprep.subr.mxu0 0.0
    %361 = vmatpush1.msra.mxu0 0.0
    %362 = vmatprep.subr.mxu0 0.0
    %363 = vmatpush1.msra.mxu0 0.0
    %364 = vmatprep.subr.mxu0 0.0
    %365 = vmatpush1.msra.mxu0 0.0
    %366 = vmatprep.mubr.f32.mxu0 0.0
    %367 = vmatmul.mubr.f32.gmra.mrb[0].mxu0 %v300
    %v368 = vpop.f32.mrb[0].mxu0
    %v369 = vadd.f32 %v294, %v368
    %v370 = vpop.f32.mrb[0].mxu0
    %v371 = vadd.f32 %v295, %v370
    %372 = vdwg.mxu0
    %v373 = vmul.f32 %v369, %v256
    %v374 = vmul.f32 %v371, %v257
    %v375 = vxor.u32 %v373, 2147483648
    %v376 = vxor.u32 %v374, 2147483648
    %v377 = vmul.f32 %v375, 1.442695
    %v378 = vpow.pop %v377
    %v379 = vmul.f32 %v376, 1.442695
    %v380 = vpow.pop %v379
    %v381 = vadd.f32 %v378, 1.0
    %v382 = vadd.f32 %v380, 1.0
    %v383 = vrcp.pop %v381
    %v384 = vmul.f32 1.0, %v383
    %v385 = vrcp.pop %v382
    %v386 = vmul.f32 1.0, %v385
    %v387 = vmul.f32 %v386, 2.0
    %v388 = vsub.f32 %v387, 1.0
    %v389 = vmul.f32 %v384, %v293
    %v390 = vmul.f32 %v384, %v388
    %392 = vrot.lane.b32.xlu0 %v390, 64
    %v393 = vpop.permute.xlu0 %392
    %v395 = vadd.f32 %v389, %v393
    %v396 = vtanh.pop %v395
    %v397 = vmul.f32 %v386, %v396
    %399 = vrot.lane.b32.xlu0 %v397, 64
    %v400 = vpop.permute.xlu0 %399
    %402 = vst.msk [vmem:[#allocation3] sm:$0xff] %vm299, %v400
    %v403 = vld [vmem:[#allocation2 + $0x20] sm:$0xff]
    %v404 = vld [vmem:[#allocation2 + $0x28] sm:$0xff]
    %v405 = vsel %vm299, %v400, 0
    %407 = vmatprep.subr.mxu0 %v232
    %408 = vmatpush1.msra.mxu0 %v231
    %409 = vmatprep.subr.mxu0 %v234
    %410 = vmatpush1.msra.mxu0 %v233
    %411 = vmatprep.subr.mxu0 %v236
    %412 = vmatpush1.msra.mxu0 %v235
    %413 = vmatprep.subr.mxu0 %v238
    %414 = vmatpush1.msra.mxu0 %v237
    %415 = vmatprep.subr.mxu0 %v240
    %416 = vmatpush1.msra.mxu0 %v239
    %417 = vmatprep.subr.mxu0 %v242
    %418 = vmatpush1.msra.mxu0 %v241
    %419 = vmatprep.subr.mxu0 %v244
    %420 = vmatpush1.msra.mxu0 %v243
    %421 = vmatprep.subr.mxu0 %v246
    %422 = vmatpush1.msra.mxu0 %v245
    %423 = vmatprep.subr.mxu0 0.0
    %424 = vmatpush1.msra.mxu0 0.0
    %425 = vmatprep.subr.mxu0 0.0
    %426 = vmatpush1.msra.mxu0 0.0
    %427 = vmatprep.subr.mxu0 0.0
    %428 = vmatpush1.msra.mxu0 0.0
    %429 = vmatprep.subr.mxu0 0.0
    %430 = vmatpush1.msra.mxu0 0.0
    %431 = vmatprep.subr.mxu0 0.0
    %432 = vmatpush1.msra.mxu0 0.0
    %433 = vmatprep.subr.mxu0 0.0
    %434 = vmatpush1.msra.mxu0 0.0
    %435 = vmatprep.subr.mxu0 0.0
    %436 = vmatpush1.msra.mxu0 0.0
    %437 = vmatprep.subr.mxu0 0.0
    %438 = vmatpush1.msra.mxu0 0.0
    %439 = vmatprep.subr.mxu0 0.0
    %440 = vmatpush1.msra.mxu0 0.0
    %441 = vmatprep.subr.mxu0 0.0
    %442 = vmatpush1.msra.mxu0 0.0
    %443 = vmatprep.subr.mxu0 0.0
    %444 = vmatpush1.msra.mxu0 0.0
    %445 = vmatprep.subr.mxu0 0.0
    %446 = vmatpush1.msra.mxu0 0.0
    %447 = vmatprep.subr.mxu0 0.0
    %448 = vmatpush1.msra.mxu0 0.0
    %449 = vmatprep.subr.mxu0 0.0
    %450 = vmatpush1.msra.mxu0 0.0
    %451 = vmatprep.subr.mxu0 0.0
    %452 = vmatpush1.msra.mxu0 0.0
    %453 = vmatprep.subr.mxu0 0.0
    %454 = vmatpush1.msra.mxu0 0.0
    %455 = vmatprep.subr.mxu0 0.0
    %456 = vmatpush1.msra.mxu0 0.0
    %457 = vmatprep.subr.mxu0 0.0
    %458 = vmatpush1.msra.mxu0 0.0
    %459 = vmatprep.subr.mxu0 0.0
    %460 = vmatpush1.msra.mxu0 0.0
    %461 = vmatprep.subr.mxu0 0.0
    %462 = vmatpush1.msra.mxu0 0.0
    %463 = vmatprep.subr.mxu0 0.0
    %464 = vmatpush1.msra.mxu0 0.0
    %465 = vmatprep.subr.mxu0 0.0
    %466 = vmatpush1.msra.mxu0 0.0
    %467 = vmatprep.subr.mxu0 0.0
    %468 = vmatpush1.msra.mxu0 0.0
    %469 = vmatprep.subr.mxu0 0.0
    %470 = vmatpush1.msra.mxu0 0.0
    %471 = vmatprep.mubr.f32.mxu0 0.0
    %472 = vmatmul.mubr.f32.gmra.mrb[0].mxu0 %v405
    %v473 = vpop.f32.mrb[0].mxu0
    %v474 = vadd.f32 %v403, %v473
    %v475 = vpop.f32.mrb[0].mxu0
    %v476 = vadd.f32 %v404, %v475
    %477 = vdwg.mxu0
    %v478 = vmul.f32 %v474, %v256
    %v479 = vmul.f32 %v476, %v257
    %v480 = vxor.u32 %v478, 2147483648
    %v481 = vxor.u32 %v479, 2147483648
    %v482 = vmul.f32 %v480, 1.442695
    %v483 = vpow.pop %v482
    %v484 = vmul.f32 %v481, 1.442695
    %v485 = vpow.pop %v484
    %v486 = vadd.f32 %v483, 1.0
    %v487 = vadd.f32 %v485, 1.0
    %v488 = vrcp.pop %v486
    %v489 = vmul.f32 1.0, %v488
    %v490 = vrcp.pop %v487
    %v491 = vmul.f32 1.0, %v490
    %v492 = vmul.f32 %v491, 2.0
    %v493 = vsub.f32 %v492, 1.0
    %v494 = vmul.f32 %v489, %v395
    %v495 = vmul.f32 %v489, %v493
    %497 = vrot.lane.b32.xlu0 %v495, 64
    %v498 = vpop.permute.xlu0 %497
    %v500 = vadd.f32 %v494, %v498
    %v501 = vtanh.pop %v500
    %v502 = vmul.f32 %v491, %v501
    %504 = vrot.lane.b32.xlu0 %v502, 64
    %v505 = vpop.permute.xlu0 %504
    %507 = vst.msk [vmem:[#allocation3 + $0x8] sm:$0xff] %vm299, %v505
    %v508 = vld [vmem:[#allocation2 + $0x30] sm:$0xff]
    %v509 = vld [vmem:[#allocation2 + $0x38] sm:$0xff]
    %v510 = vsel %vm299, %v505, 0
    %512 = vmatprep.subr.mxu0 %v232
    %513 = vmatpush1.msra.mxu0 %v231
    %514 = vmatprep.subr.mxu0 %v234
    %515 = vmatpush1.msra.mxu0 %v233
    %516 = vmatprep.subr.mxu0 %v236
    %517 = vmatpush1.msra.mxu0 %v235
    %518 = vmatprep.subr.mxu0 %v238
    %519 = vmatpush1.msra.mxu0 %v237
    %520 = vmatprep.subr.mxu0 %v240
    %521 = vmatpush1.msra.mxu0 %v239
    %522 = vmatprep.subr.mxu0 %v242
    %523 = vmatpush1.msra.mxu0 %v241
    %524 = vmatprep.subr.mxu0 %v244
    %525 = vmatpush1.msra.mxu0 %v243
    %526 = vmatprep.subr.mxu0 %v246
    %527 = vmatpush1.msra.mxu0 %v245
    %528 = vmatprep.subr.mxu0 0.0
    %529 = vmatpush1.msra.mxu0 0.0
    %530 = vmatprep.subr.mxu0 0.0
    %531 = vmatpush1.msra.mxu0 0.0
    %532 = vmatprep.subr.mxu0 0.0
    %533 = vmatpush1.msra.mxu0 0.0
    %534 = vmatprep.subr.mxu0 0.0
    %535 = vmatpush1.msra.mxu0 0.0
    %536 = vmatprep.subr.mxu0 0.0
    %537 = vmatpush1.msra.mxu0 0.0
    %538 = vmatprep.subr.mxu0 0.0
    %539 = vmatpush1.msra.mxu0 0.0
    %540 = vmatprep.subr.mxu0 0.0
    %541 = vmatpush1.msra.mxu0 0.0
    %542 = vmatprep.subr.mxu0 0.0
    %543 = vmatpush1.msra.mxu0 0.0
    %544 = vmatprep.subr.mxu0 0.0
    %545 = vmatpush1.msra.mxu0 0.0
    %546 = vmatprep.subr.mxu0 0.0
    %547 = vmatpush1.msra.mxu0 0.0
    %548 = vmatprep.subr.mxu0 0.0
    %549 = vmatpush1.msra.mxu0 0.0
    %550 = vmatprep.subr.mxu0 0.0
    %551 = vmatpush1.msra.mxu0 0.0
    %552 = vmatprep.subr.mxu0 0.0
    %553 = vmatpush1.msra.mxu0 0.0
    %554 = vmatprep.subr.mxu0 0.0
    %555 = vmatpush1.msra.mxu0 0.0
    %556 = vmatprep.subr.mxu0 0.0
    %557 = vmatpush1.msra.mxu0 0.0
    %558 = vmatprep.subr.mxu0 0.0
    %559 = vmatpush1.msra.mxu0 0.0
    %560 = vmatprep.subr.mxu0 0.0
    %561 = vmatpush1.msra.mxu0 0.0
    %562 = vmatprep.subr.mxu0 0.0
    %563 = vmatpush1.msra.mxu0 0.0
    %564 = vmatprep.subr.mxu0 0.0
    %565 = vmatpush1.msra.mxu0 0.0
    %566 = vmatprep.subr.mxu0 0.0
    %567 = vmatpush1.msra.mxu0 0.0
    %568 = vmatprep.subr.mxu0 0.0
    %569 = vmatpush1.msra.mxu0 0.0
    %570 = vmatprep.subr.mxu0 0.0
    %571 = vmatpush1.msra.mxu0 0.0
    %572 = vmatprep.subr.mxu0 0.0
    %573 = vmatpush1.msra.mxu0 0.0
    %574 = vmatprep.subr.mxu0 0.0
    %575 = vmatpush1.msra.mxu0 0.0
    %576 = vmatprep.mubr.f32.mxu0 0.0
    %577 = vmatmul.mubr.f32.gmra.mrb[0].mxu0 %v510
    %v578 = vpop.f32.mrb[0].mxu0
    %v579 = vadd.f32 %v508, %v578
    %v580 = vpop.f32.mrb[0].mxu0
    %v581 = vadd.f32 %v509, %v580
    %582 = vdwg.mxu0
    %v583 = vmul.f32 %v579, %v256
    %v584 = vmul.f32 %v581, %v257
    %v585 = vxor.u32 %v583, 2147483648
    %v586 = vxor.u32 %v584, 2147483648
    %v587 = vmul.f32 %v585, 1.442695
    %v588 = vpow.pop %v587
    %v589 = vmul.f32 %v586, 1.442695
    %v590 = vpow.pop %v589
    %v591 = vadd.f32 %v588, 1.0
    %v592 = vadd.f32 %v590, 1.0
    %v593 = vrcp.pop %v591
    %v594 = vmul.f32 1.0, %v593
    %v595 = vrcp.pop %v592
    %v596 = vmul.f32 1.0, %v595
    %v597 = vmul.f32 %v596, 2.0
    %v598 = vsub.f32 %v597, 1.0
    %v599 = vmul.f32 %v594, %v500
    %v600 = vmul.f32 %v594, %v598
    %602 = vrot.lane.b32.xlu0 %v600, 64
    %v603 = vpop.permute.xlu0 %602
    %v605 = vadd.f32 %v599, %v603
    %v606 = vtanh.pop %v605
    %v607 = vmul.f32 %v596, %v606
    %609 = vrot.lane.b32.xlu0 %v607, 64
    %v610 = vpop.permute.xlu0 %609
    %612 = vst.msk [vmem:[#allocation3 + $0x10] sm:$0xff] %vm299, %v610
    %v613 = vld [vmem:[#allocation2 + $0x40] sm:$0xff]
    %v614 = vld [vmem:[#allocation2 + $0x48] sm:$0xff]
    %v615 = vsel %vm299, %v610, 0
    %617 = vmatprep.subr.mxu0 %v232
    %618 = vmatpush1.msra.mxu0 %v231
    %619 = vmatprep.subr.mxu0 %v234
    %620 = vmatpush1.msra.mxu0 %v233
    %621 = vmatprep.subr.mxu0 %v236
    %622 = vmatpush1.msra.mxu0 %v235
    %623 = vmatprep.subr.mxu0 %v238
    %624 = vmatpush1.msra.mxu0 %v237
    %625 = vmatprep.subr.mxu0 %v240
    %626 = vmatpush1.msra.mxu0 %v239
    %627 = vmatprep.subr.mxu0 %v242
    %628 = vmatpush1.msra.mxu0 %v241
    %629 = vmatprep.subr.mxu0 %v244
    %630 = vmatpush1.msra.mxu0 %v243
    %631 = vmatprep.subr.mxu0 %v246
    %632 = vmatpush1.msra.mxu0 %v245
    %633 = vmatprep.subr.mxu0 0.0
    %634 = vmatpush1.msra.mxu0 0.0
    %635 = vmatprep.subr.mxu0 0.0
    %636 = vmatpush1.msra.mxu0 0.0
    %637 = vmatprep.subr.mxu0 0.0
    %638 = vmatpush1.msra.mxu0 0.0
    %639 = vmatprep.subr.mxu0 0.0
    %640 = vmatpush1.msra.mxu0 0.0
    %641 = vmatprep.subr.mxu0 0.0
    %642 = vmatpush1.msra.mxu0 0.0
    %643 = vmatprep.subr.mxu0 0.0
    %644 = vmatpush1.msra.mxu0 0.0
    %645 = vmatprep.subr.mxu0 0.0
    %646 = vmatpush1.msra.mxu0 0.0
    %647 = vmatprep.subr.mxu0 0.0
    %648 = vmatpush1.msra.mxu0 0.0
    %649 = vmatprep.subr.mxu0 0.0
    %650 = vmatpush1.msra.mxu0 0.0
    %651 = vmatprep.subr.mxu0 0.0
    %652 = vmatpush1.msra.mxu0 0.0
    %653 = vmatprep.subr.mxu0 0.0
    %654 = vmatpush1.msra.mxu0 0.0
    %655 = vmatprep.subr.mxu0 0.0
    %656 = vmatpush1.msra.mxu0 0.0
    %657 = vmatprep.subr.mxu0 0.0
    %658 = vmatpush1.msra.mxu0 0.0
    %659 = vmatprep.subr.mxu0 0.0
    %660 = vmatpush1.msra.mxu0 0.0
    %661 = vmatprep.subr.mxu0 0.0
    %662 = vmatpush1.msra.mxu0 0.0
    %663 = vmatprep.subr.mxu0 0.0
    %664 = vmatpush1.msra.mxu0 0.0
    %665 = vmatprep.subr.mxu0 0.0
    %666 = vmatpush1.msra.mxu0 0.0
    %667 = vmatprep.subr.mxu0 0.0
    %668 = vmatpush1.msra.mxu0 0.0
    %669 = vmatprep.subr.mxu0 0.0
    %670 = vmatpush1.msra.mxu0 0.0
    %671 = vmatprep.subr.mxu0 0.0
    %672 = vmatpush1.msra.mxu0 0.0
    %673 = vmatprep.subr.mxu0 0.0
    %674 = vmatpush1.msra.mxu0 0.0
    %675 = vmatprep.subr.mxu0 0.0
    %676 = vmatpush1.msra.mxu0 0.0
    %677 = vmatprep.subr.mxu0 0.0
    %678 = vmatpush1.msra.mxu0 0.0
    %679 = vmatprep.subr.mxu0 0.0
    %680 = vmatpush1.msra.mxu0 0.0
    %681 = vmatprep.mubr.f32.mxu0 0.0
    %682 = vmatmul.mubr.f32.gmra.mrb[0].mxu0 %v615
    %v683 = vpop.f32.mrb[0].mxu0
    %v684 = vadd.f32 %v613, %v683
    %v685 = vpop.f32.mrb[0].mxu0
    %v686 = vadd.f32 %v614, %v685
    %687 = vdwg.mxu0
    %v688 = vmul.f32 %v684, %v256
    %v689 = vmul.f32 %v686, %v257
    %v690 = vxor.u32 %v688, 2147483648
    %v691 = vxor.u32 %v689, 2147483648
    %v692 = vmul.f32 %v690, 1.442695
    %v693 = vpow.pop %v692
    %v694 = vmul.f32 %v691, 1.442695
    %v695 = vpow.pop %v694
    %v696 = vadd.f32 %v693, 1.0
    %v697 = vadd.f32 %v695, 1.0
    %v698 = vrcp.pop %v696
    %v699 = vmul.f32 1.0, %v698
    %v700 = vrcp.pop %v697
    %v701 = vmul.f32 1.0, %v700
    %v702 = vmul.f32 %v701, 2.0
    %v703 = vsub.f32 %v702, 1.0
    %v704 = vmul.f32 %v699, %v605
    %v705 = vmul.f32 %v699, %v703
    %707 = vrot.lane.b32.xlu0 %v705, 64
    %v708 = vpop.permute.xlu0 %707
    %v710 = vadd.f32 %v704, %v708
    %v711 = vtanh.pop %v710
    %v712 = vmul.f32 %v701, %v711
    %714 = vrot.lane.b32.xlu0 %v712, 64
    %v715 = vpop.permute.xlu0 %714
    %717 = vst.msk [vmem:[#allocation3 + $0x18] sm:$0xff] %vm299, %v715
    %v718 = vld [vmem:[#allocation2 + $0x50] sm:$0xff]
    %v719 = vld [vmem:[#allocation2 + $0x58] sm:$0xff]
    %v720 = vsel %vm299, %v715, 0
    %722 = vmatprep.subr.mxu0 %v232
    %723 = vmatpush1.msra.mxu0 %v231
    %724 = vmatprep.subr.mxu0 %v234
    %725 = vmatpush1.msra.mxu0 %v233
    %726 = vmatprep.subr.mxu0 %v236
    %727 = vmatpush1.msra.mxu0 %v235
    %728 = vmatprep.subr.mxu0 %v238
    %729 = vmatpush1.msra.mxu0 %v237
    %730 = vmatprep.subr.mxu0 %v240
    %731 = vmatpush1.msra.mxu0 %v239
    %732 = vmatprep.subr.mxu0 %v242
    %733 = vmatpush1.msra.mxu0 %v241
    %734 = vmatprep.subr.mxu0 %v244
    %735 = vmatpush1.msra.mxu0 %v243
    %736 = vmatprep.subr.mxu0 %v246
    %737 = vmatpush1.msra.mxu0 %v245
    %738 = vmatprep.subr.mxu0 0.0
    %739 = vmatpush1.msra.mxu0 0.0
    %740 = vmatprep.subr.mxu0 0.0
    %741 = vmatpush1.msra.mxu0 0.0
    %742 = vmatprep.subr.mxu0 0.0
    %743 = vmatpush1.msra.mxu0 0.0
    %744 = vmatprep.subr.mxu0 0.0
    %745 = vmatpush1.msra.mxu0 0.0
    %746 = vmatprep.subr.mxu0 0.0
    %747 = vmatpush1.msra.mxu0 0.0
    %748 = vmatprep.subr.mxu0 0.0
    %749 = vmatpush1.msra.mxu0 0.0
    %750 = vmatprep.subr.mxu0 0.0
    %751 = vmatpush1.msra.mxu0 0.0
    %752 = vmatprep.subr.mxu0 0.0
    %753 = vmatpush1.msra.mxu0 0.0
    %754 = vmatprep.subr.mxu0 0.0
    %755 = vmatpush1.msra.mxu0 0.0
    %756 = vmatprep.subr.mxu0 0.0
    %757 = vmatpush1.msra.mxu0 0.0
    %758 = vmatprep.subr.mxu0 0.0
    %759 = vmatpush1.msra.mxu0 0.0
    %760 = vmatprep.subr.mxu0 0.0
    %761 = vmatpush1.msra.mxu0 0.0
    %762 = vmatprep.subr.mxu0 0.0
    %763 = vmatpush1.msra.mxu0 0.0
    %764 = vmatprep.subr.mxu0 0.0
    %765 = vmatpush1.msra.mxu0 0.0
    %766 = vmatprep.subr.mxu0 0.0
    %767 = vmatpush1.msra.mxu0 0.0
    %768 = vmatprep.subr.mxu0 0.0
    %769 = vmatpush1.msra.mxu0 0.0
    %770 = vmatprep.subr.mxu0 0.0
    %771 = vmatpush1.msra.mxu0 0.0
    %772 = vmatprep.subr.mxu0 0.0
    %773 = vmatpush1.msra.mxu0 0.0
    %774 = vmatprep.subr.mxu0 0.0
    %775 = vmatpush1.msra.mxu0 0.0
    %776 = vmatprep.subr.mxu0 0.0
    %777 = vmatpush1.msra.mxu0 0.0
    %778 = vmatprep.subr.mxu0 0.0
    %779 = vmatpush1.msra.mxu0 0.0
    %780 = vmatprep.subr.mxu0 0.0
    %781 = vmatpush1.msra.mxu0 0.0
    %782 = vmatprep.subr.mxu0 0.0
    %783 = vmatpush1.msra.mxu0 0.0
    %784 = vmatprep.subr.mxu0 0.0
    %785 = vmatpush1.msra.mxu0 0.0
    %786 = vmatprep.mubr.f32.mxu0 0.0
    %787 = vmatmul.mubr.f32.gmra.mrb[0].mxu0 %v720
    %v788 = vpop.f32.mrb[0].mxu0
    %v789 = vadd.f32 %v718, %v788
    %v790 = vpop.f32.mrb[0].mxu0
    %v791 = vadd.f32 %v719, %v790
    %792 = vdwg.mxu0
    %v793 = vmul.f32 %v789, %v256
    %v794 = vmul.f32 %v791, %v257
    %v795 = vxor.u32 %v793, 2147483648
    %v796 = vxor.u32 %v794, 2147483648
    %v797 = vmul.f32 %v795, 1.442695
    %v798 = vpow.pop %v797
    %v799 = vmul.f32 %v796, 1.442695
    %v800 = vpow.pop %v799
    %v801 = vadd.f32 %v798, 1.0
    %v802 = vadd.f32 %v800, 1.0
    %v803 = vrcp.pop %v801
    %v804 = vmul.f32 1.0, %v803
    %v805 = vrcp.pop %v802
    %v806 = vmul.f32 1.0, %v805
    %v807 = vmul.f32 %v806, 2.0
    %v808 = vsub.f32 %v807, 1.0
    %v809 = vmul.f32 %v804, %v710
    %v810 = vmul.f32 %v804, %v808
    %812 = vrot.lane.b32.xlu0 %v810, 64
    %v813 = vpop.permute.xlu0 %812
    %v815 = vadd.f32 %v809, %v813
    %v816 = vtanh.pop %v815
    %v817 = vmul.f32 %v806, %v816
    %819 = vrot.lane.b32.xlu0 %v817, 64
    %v820 = vpop.permute.xlu0 %819
    %822 = vst.msk [vmem:[#allocation3 + $0x20] sm:$0xff] %vm299, %v820
    %v823 = vld [vmem:[#allocation2 + $0x60] sm:$0xff]
    %v824 = vld [vmem:[#allocation2 + $0x68] sm:$0xff]
    %v825 = vsel %vm299, %v820, 0
    %827 = vmatprep.subr.mxu0 %v232
    %828 = vmatpush1.msra.mxu0 %v231
    %829 = vmatprep.subr.mxu0 %v234
    %830 = vmatpush1.msra.mxu0 %v233
    %831 = vmatprep.subr.mxu0 %v236
    %832 = vmatpush1.msra.mxu0 %v235
    %833 = vmatprep.subr.mxu0 %v238
    %834 = vmatpush1.msra.mxu0 %v237
    %835 = vmatprep.subr.mxu0 %v240
    %836 = vmatpush1.msra.mxu0 %v239
    %837 = vmatprep.subr.mxu0 %v242
    %838 = vmatpush1.msra.mxu0 %v241
    %839 = vmatprep.subr.mxu0 %v244
    %840 = vmatpush1.msra.mxu0 %v243
    %841 = vmatprep.subr.mxu0 %v246
    %842 = vmatpush1.msra.mxu0 %v245
    %843 = vmatprep.subr.mxu0 0.0
    %844 = vmatpush1.msra.mxu0 0.0
    %845 = vmatprep.subr.mxu0 0.0
    %846 = vmatpush1.msra.mxu0 0.0
    %847 = vmatprep.subr.mxu0 0.0
    %848 = vmatpush1.msra.mxu0 0.0
    %849 = vmatprep.subr.mxu0 0.0
    %850 = vmatpush1.msra.mxu0 0.0
    %851 = vmatprep.subr.mxu0 0.0
    %852 = vmatpush1.msra.mxu0 0.0
    %853 = vmatprep.subr.mxu0 0.0
    %854 = vmatpush1.msra.mxu0 0.0
    %855 = vmatprep.subr.mxu0 0.0
    %856 = vmatpush1.msra.mxu0 0.0
    %857 = vmatprep.subr.mxu0 0.0
    %858 = vmatpush1.msra.mxu0 0.0
    %859 = vmatprep.subr.mxu0 0.0
    %860 = vmatpush1.msra.mxu0 0.0
    %861 = vmatprep.subr.mxu0 0.0
    %862 = vmatpush1.msra.mxu0 0.0
    %863 = vmatprep.subr.mxu0 0.0
    %864 = vmatpush1.msra.mxu0 0.0
    %865 = vmatprep.subr.mxu0 0.0
    %866 = vmatpush1.msra.mxu0 0.0
    %867 = vmatprep.subr.mxu0 0.0
    %868 = vmatpush1.msra.mxu0 0.0
    %869 = vmatprep.subr.mxu0 0.0
    %870 = vmatpush1.msra.mxu0 0.0
    %871 = vmatprep.subr.mxu0 0.0
    %872 = vmatpush1.msra.mxu0 0.0
    %873 = vmatprep.subr.mxu0 0.0
    %874 = vmatpush1.msra.mxu0 0.0
    %875 = vmatprep.subr.mxu0 0.0
    %876 = vmatpush1.msra.mxu0 0.0
    %877 = vmatprep.subr.mxu0 0.0
    %878 = vmatpush1.msra.mxu0 0.0
    %879 = vmatprep.subr.mxu0 0.0
    %880 = vmatpush1.msra.mxu0 0.0
    %881 = vmatprep.subr.mxu0 0.0
    %882 = vmatpush1.msra.mxu0 0.0
    %883 = vmatprep.subr.mxu0 0.0
    %884 = vmatpush1.msra.mxu0 0.0
    %885 = vmatprep.subr.mxu0 0.0
    %886 = vmatpush1.msra.mxu0 0.0
    %887 = vmatprep.subr.mxu0 0.0
    %888 = vmatpush1.msra.mxu0 0.0
    %889 = vmatprep.subr.mxu0 0.0
    %890 = vmatpush1.msra.mxu0 0.0
    %891 = vmatprep.mubr.f32.mxu0 0.0
    %892 = vmatmul.mubr.f32.gmra.mrb[0].mxu0 %v825
    %v893 = vpop.f32.mrb[0].mxu0
    %v894 = vadd.f32 %v823, %v893
    %v895 = vpop.f32.mrb[0].mxu0
    %v896 = vadd.f32 %v824, %v895
    %897 = vdwg.mxu0
    %v898 = vmul.f32 %v894, %v256
    %v899 = vmul.f32 %v896, %v257
    %v900 = vxor.u32 %v898, 2147483648
    %v901 = vxor.u32 %v899, 2147483648
    %v902 = vmul.f32 %v900, 1.442695
    %v903 = vpow.pop %v902
    %v904 = vmul.f32 %v901, 1.442695
    %v905 = vpow.pop %v904
    %v906 = vadd.f32 %v903, 1.0
    %v907 = vadd.f32 %v905, 1.0
    %v908 = vrcp.pop %v906
    %v909 = vmul.f32 1.0, %v908
    %v910 = vrcp.pop %v907
    %v911 = vmul.f32 1.0, %v910
    %v912 = vmul.f32 %v911, 2.0
    %v913 = vsub.f32 %v912, 1.0
    %v914 = vmul.f32 %v909, %v815
    %v915 = vmul.f32 %v909, %v913
    %917 = vrot.lane.b32.xlu0 %v915, 64
    %v918 = vpop.permute.xlu0 %917
    %v920 = vadd.f32 %v914, %v918
    %v921 = vtanh.pop %v920
    %v922 = vmul.f32 %v911, %v921
    %924 = vrot.lane.b32.xlu0 %v922, 64
    %v925 = vpop.permute.xlu0 %924
    %927 = vst.msk [vmem:[#allocation3 + $0x28] sm:$0xff] %vm299, %v925
    %v928 = vld [vmem:[#allocation2 + $0x70] sm:$0xff]
    %v929 = vld [vmem:[#allocation2 + $0x78] sm:$0xff]
    %v930 = vsel %vm299, %v925, 0
    %932 = vmatprep.subr.mxu0 %v232
    %933 = vmatpush1.msra.mxu0 %v231
    %934 = vmatprep.subr.mxu0 %v234
    %935 = vmatpush1.msra.mxu0 %v233
    %936 = vmatprep.subr.mxu0 %v236
    %937 = vmatpush1.msra.mxu0 %v235
    %938 = vmatprep.subr.mxu0 %v238
    %939 = vmatpush1.msra.mxu0 %v237
    %940 = vmatprep.subr.mxu0 %v240
    %941 = vmatpush1.msra.mxu0 %v239
    %942 = vmatprep.subr.mxu0 %v242
    %943 = vmatpush1.msra.mxu0 %v241
    %944 = vmatprep.subr.mxu0 %v244
    %945 = vmatpush1.msra.mxu0 %v243
    %946 = vmatprep.subr.mxu0 %v246
    %947 = vmatpush1.msra.mxu0 %v245
    %948 = vmatprep.subr.mxu0 0.0
    %949 = vmatpush1.msra.mxu0 0.0
    %950 = vmatprep.subr.mxu0 0.0
    %951 = vmatpush1.msra.mxu0 0.0
    %952 = vmatprep.subr.mxu0 0.0
    %953 = vmatpush1.msra.mxu0 0.0
    %954 = vmatprep.subr.mxu0 0.0
    %955 = vmatpush1.msra.mxu0 0.0
    %956 = vmatprep.subr.mxu0 0.0
    %957 = vmatpush1.msra.mxu0 0.0
    %958 = vmatprep.subr.mxu0 0.0
    %959 = vmatpush1.msra.mxu0 0.0
    %960 = vmatprep.subr.mxu0 0.0
    %961 = vmatpush1.msra.mxu0 0.0
    %962 = vmatprep.subr.mxu0 0.0
    %963 = vmatpush1.msra.mxu0 0.0
    %964 = vmatprep.subr.mxu0 0.0
    %965 = vmatpush1.msra.mxu0 0.0
    %966 = vmatprep.subr.mxu0 0.0
    %967 = vmatpush1.msra.mxu0 0.0
    %968 = vmatprep.subr.mxu0 0.0
    %969 = vmatpush1.msra.mxu0 0.0
    %970 = vmatprep.subr.mxu0 0.0
    %971 = vmatpush1.msra.mxu0 0.0
    %972 = vmatprep.subr.mxu0 0.0
    %973 = vmatpush1.msra.mxu0 0.0
    %974 = vmatprep.subr.mxu0 0.0
    %975 = vmatpush1.msra.mxu0 0.0
    %976 = vmatprep.subr.mxu0 0.0
    %977 = vmatpush1.msra.mxu0 0.0
    %978 = vmatprep.subr.mxu0 0.0
    %979 = vmatpush1.msra.mxu0 0.0
    %980 = vmatprep.subr.mxu0 0.0
    %981 = vmatpush1.msra.mxu0 0.0
    %982 = vmatprep.subr.mxu0 0.0
    %983 = vmatpush1.msra.mxu0 0.0
    %984 = vmatprep.subr.mxu0 0.0
    %985 = vmatpush1.msra.mxu0 0.0
    %986 = vmatprep.subr.mxu0 0.0
    %987 = vmatpush1.msra.mxu0 0.0
    %988 = vmatprep.subr.mxu0 0.0
    %989 = vmatpush1.msra.mxu0 0.0
    %990 = vmatprep.subr.mxu0 0.0
    %991 = vmatpush1.msra.mxu0 0.0
    %992 = vmatprep.subr.mxu0 0.0
    %993 = vmatpush1.msra.mxu0 0.0
    %994 = vmatprep.subr.mxu0 0.0
    %995 = vmatpush1.msra.mxu0 0.0
    %996 = vmatprep.mubr.f32.mxu0 0.0
    %997 = vmatmul.mubr.f32.gmra.mrb[0].mxu0 %v930
    %v998 = vpop.f32.mrb[0].mxu0
    %v999 = vadd.f32 %v928, %v998
    %v1000 = vpop.f32.mrb[0].mxu0
    %v1001 = vadd.f32 %v929, %v1000
    %1002 = vdwg.mxu0
    %v1003 = vmul.f32 %v999, %v256
    %v1004 = vmul.f32 %v1001, %v257
    %v1005 = vxor.u32 %v1003, 2147483648
    %v1006 = vxor.u32 %v1004, 2147483648
    %v1007 = vmul.f32 %v1005, 1.442695
    %v1008 = vpow.pop %v1007
    %v1009 = vmul.f32 %v1006, 1.442695
    %v1010 = vpow.pop %v1009
    %v1011 = vadd.f32 %v1008, 1.0
    %v1012 = vadd.f32 %v1010, 1.0
    %v1013 = vrcp.pop %v1011
    %v1014 = vmul.f32 1.0, %v1013
    %v1015 = vrcp.pop %v1012
    %v1016 = vmul.f32 1.0, %v1015
    %v1017 = vmul.f32 %v1016, 2.0
    %v1018 = vsub.f32 %v1017, 1.0
    %v1019 = vmul.f32 %v1014, %v920
    %v1020 = vmul.f32 %v1014, %v1018
    %1022 = vrot.lane.b32.xlu0 %v1020, 64
    %v1023 = vpop.permute.xlu0 %1022
    %v1025 = vadd.f32 %v1019, %v1023
    %v1026 = vtanh.pop %v1025
    %v1027 = vmul.f32 %v1016, %v1026
    %1029 = vrot.lane.b32.xlu0 %v1027, 64
    %v1030 = vpop.permute.xlu0 %1029
    %1032 = vst.msk [vmem:[#allocation3 + $0x30] sm:$0xff] %vm299, %v1030
    %v1033 = vld [vmem:[#allocation2 + $0x80] sm:$0xff]
    %v1034 = vld [vmem:[#allocation2 + $0x88] sm:$0xff]
    %v1035 = vsel %vm299, %v1030, 0
    %1037 = vmatprep.subr.mxu0 %v232
    %1038 = vmatpush1.msra.mxu0 %v231
    %1039 = vmatprep.subr.mxu0 %v234
    %1040 = vmatpush1.msra.mxu0 %v233
    %1041 = vmatprep.subr.mxu0 %v236
    %1042 = vmatpush1.msra.mxu0 %v235
    %1043 = vmatprep.subr.mxu0 %v238
    %1044 = vmatpush1.msra.mxu0 %v237
    %1045 = vmatprep.subr.mxu0 %v240
    %1046 = vmatpush1.msra.mxu0 %v239
    %1047 = vmatprep.subr.mxu0 %v242
    %1048 = vmatpush1.msra.mxu0 %v241
    %1049 = vmatprep.subr.mxu0 %v244
    %1050 = vmatpush1.msra.mxu0 %v243
    %1051 = vmatprep.subr.mxu0 %v246
    %1052 = vmatpush1.msra.mxu0 %v245
    %1053 = vmatprep.subr.mxu0 0.0
    %1054 = vmatpush1.msra.mxu0 0.0
    %1055 = vmatprep.subr.mxu0 0.0
    %1056 = vmatpush1.msra.mxu0 0.0
    %1057 = vmatprep.subr.mxu0 0.0
    %1058 = vmatpush1.msra.mxu0 0.0
    %1059 = vmatprep.subr.mxu0 0.0
    %1060 = vmatpush1.msra.mxu0 0.0
    %1061 = vmatprep.subr.mxu0 0.0
    %1062 = vmatpush1.msra.mxu0 0.0
    %1063 = vmatprep.subr.mxu0 0.0
    %1064 = vmatpush1.msra.mxu0 0.0
    %1065 = vmatprep.subr.mxu0 0.0
    %1066 = vmatpush1.msra.mxu0 0.0
    %1067 = vmatprep.subr.mxu0 0.0
    %1068 = vmatpush1.msra.mxu0 0.0
    %1069 = vmatprep.subr.mxu0 0.0
    %1070 = vmatpush1.msra.mxu0 0.0
    %1071 = vmatprep.subr.mxu0 0.0
    %1072 = vmatpush1.msra.mxu0 0.0
    %1073 = vmatprep.subr.mxu0 0.0
    %1074 = vmatpush1.msra.mxu0 0.0
    %1075 = vmatprep.subr.mxu0 0.0
    %1076 = vmatpush1.msra.mxu0 0.0
    %1077 = vmatprep.subr.mxu0 0.0
    %1078 = vmatpush1.msra.mxu0 0.0
    %1079 = vmatprep.subr.mxu0 0.0
    %1080 = vmatpush1.msra.mxu0 0.0
    %1081 = vmatprep.subr.mxu0 0.0
    %1082 = vmatpush1.msra.mxu0 0.0
    %1083 = vmatprep.subr.mxu0 0.0
    %1084 = vmatpush1.msra.mxu0 0.0
    %1085 = vmatprep.subr.mxu0 0.0
    %1086 = vmatpush1.msra.mxu0 0.0
    %1087 = vmatprep.subr.mxu0 0.0
    %1088 = vmatpush1.msra.mxu0 0.0
    %1089 = vmatprep.subr.mxu0 0.0
    %1090 = vmatpush1.msra.mxu0 0.0
    %1091 = vmatprep.subr.mxu0 0.0
    %1092 = vmatpush1.msra.mxu0 0.0
    %1093 = vmatprep.subr.mxu0 0.0
    %1094 = vmatpush1.msra.mxu0 0.0
    %1095 = vmatprep.subr.mxu0 0.0
    %1096 = vmatpush1.msra.mxu0 0.0
    %1097 = vmatprep.subr.mxu0 0.0
    %1098 = vmatpush1.msra.mxu0 0.0
    %1099 = vmatprep.subr.mxu0 0.0
    %1100 = vmatpush1.msra.mxu0 0.0
    %1101 = vmatprep.mubr.f32.mxu0 0.0
    %1102 = vmatmul.mubr.f32.gmra.mrb[0].mxu0 %v1035
    %v1103 = vpop.f32.mrb[0].mxu0
    %v1104 = vadd.f32 %v1033, %v1103
    %v1105 = vpop.f32.mrb[0].mxu0
    %v1106 = vadd.f32 %v1034, %v1105
    %1107 = vdwg.mxu0
    %v1108 = vmul.f32 %v1104, %v256
    %v1109 = vmul.f32 %v1106, %v257
    %v1110 = vxor.u32 %v1108, 2147483648
    %v1111 = vxor.u32 %v1109, 2147483648
    %v1112 = vmul.f32 %v1110, 1.442695
    %v1113 = vpow.pop %v1112
    %v1114 = vmul.f32 %v1111, 1.442695
    %v1115 = vpow.pop %v1114
    %v1116 = vadd.f32 %v1113, 1.0
    %v1117 = vadd.f32 %v1115, 1.0
    %v1118 = vrcp.pop %v1116
    %v1119 = vmul.f32 1.0, %v1118
    %v1120 = vrcp.pop %v1117
    %v1121 = vmul.f32 1.0, %v1120
    %v1122 = vmul.f32 %v1121, 2.0
    %v1123 = vsub.f32 %v1122, 1.0
    %v1124 = vmul.f32 %v1119, %v1025
    %v1125 = vmul.f32 %v1119, %v1123
    %1127 = vrot.lane.b32.xlu0 %v1125, 64
    %v1128 = vpop.permute.xlu0 %1127
    %v1130 = vadd.f32 %v1124, %v1128
    %v1131 = vtanh.pop %v1130
    %v1132 = vmul.f32 %v1121, %v1131
    %1134 = vrot.lane.b32.xlu0 %v1132, 64
    %v1135 = vpop.permute.xlu0 %1134
    %1137 = vst.msk [vmem:[#allocation3 + $0x38] sm:$0xff] %vm299, %v1135
    %v1138 = vld [vmem:[#allocation3] sm:$0xff]
    %v1139 = vld [vmem:[#allocation3 + $0x8] sm:$0xff]
    %v1140 = vld [vmem:[#allocation3 + $0x10] sm:$0xff]
    %v1141 = vld [vmem:[#allocation3 + $0x18] sm:$0xff]
    %v1142 = vld [vmem:[#allocation3 + $0x20] sm:$0xff]
    %v1143 = vld [vmem:[#allocation3 + $0x28] sm:$0xff]
    %v1144 = vld [vmem:[#allocation3 + $0x30] sm:$0xff]
    %v1145 = vld [vmem:[#allocation3 + $0x38] sm:$0xff]
    %v1146 = vld [vmem:[#allocation7 + $0x190] sm:$0xff]
    %v1147 = vld [vmem:[#allocation7 + $0x1a0] sm:$0xff]
    %v1148 = vld [vmem:[#allocation7 + $0x1b0] sm:$0xff]
    %v1149 = vld [vmem:[#allocation7 + $0x1c0] sm:$0xff]
    %v1150 = vld [vmem:[#allocation7 + $0x1d0] sm:$0xff]
    %v1151 = vld [vmem:[#allocation7 + $0x1e0] sm:$0xff]
    %v1152 = vld [vmem:[#allocation7 + $0x1f0] sm:$0xff]
    %v1153 = vld [vmem:[#allocation7 + $0x200] sm:$0xff]
    %v1154 = vld [vmem:[#allocation7 + $0x210] ss:$0 sm:$0xff]
    %v1156 = vsel %vm299, %v1138, 0
    %v1159 = vsel %vm299, %v1139, 0
    %v1162 = vsel %vm299, %v1140, 0
    %v1165 = vsel %vm299, %v1141, 0
    %v1168 = vsel %vm299, %v1142, 0
    %v1171 = vsel %vm299, %v1143, 0
    %v1174 = vsel %vm299, %v1144, 0
    %v1177 = vsel %vm299, %v1145, 0
    %1179 = vmatprep.subr.mxu0 0.0
    %1180 = vmatpush1.msra.mxu0 %v1146
    %1181 = vmatprep.subr.mxu0 0.0
    %1182 = vmatpush1.msra.mxu0 %v1147
    %1183 = vmatprep.subr.mxu0 0.0
    %1184 = vmatpush1.msra.mxu0 %v1148
    %1185 = vmatprep.subr.mxu0 0.0
    %1186 = vmatpush1.msra.mxu0 %v1149
    %1187 = vmatprep.subr.mxu0 0.0
    %1188 = vmatpush1.msra.mxu0 %v1150
    %1189 = vmatprep.subr.mxu0 0.0
    %1190 = vmatpush1.msra.mxu0 %v1151
    %1191 = vmatprep.subr.mxu0 0.0
    %1192 = vmatpush1.msra.mxu0 %v1152
    %1193 = vmatprep.subr.mxu0 0.0
    %1194 = vmatpush1.msra.mxu0 %v1153
    %1195 = vmatprep.subr.mxu0 0.0
    %1196 = vmatpush1.msra.mxu0 0.0
    %1197 = vmatprep.subr.mxu0 0.0
    %1198 = vmatpush1.msra.mxu0 0.0
    %1199 = vmatprep.subr.mxu0 0.0
    %1200 = vmatpush1.msra.mxu0 0.0
    %1201 = vmatprep.subr.mxu0 0.0
    %1202 = vmatpush1.msra.mxu0 0.0
    %1203 = vmatprep.subr.mxu0 0.0
    %1204 = vmatpush1.msra.mxu0 0.0
    %1205 = vmatprep.subr.mxu0 0.0
    %1206 = vmatpush1.msra.mxu0 0.0
    %1207 = vmatprep.subr.mxu0 0.0
    %1208 = vmatpush1.msra.mxu0 0.0
    %1209 = vmatprep.subr.mxu0 0.0
    %1210 = vmatpush1.msra.mxu0 0.0
    %1211 = vmatprep.subr.mxu0 0.0
    %1212 = vmatpush1.msra.mxu0 0.0
    %1213 = vmatprep.subr.mxu0 0.0
    %1214 = vmatpush1.msra.mxu0 0.0
    %1215 = vmatprep.subr.mxu0 0.0
    %1216 = vmatpush1.msra.mxu0 0.0
    %1217 = vmatprep.subr.mxu0 0.0
    %1218 = vmatpush1.msra.mxu0 0.0
    %1219 = vmatprep.subr.mxu0 0.0
    %1220 = vmatpush1.msra.mxu0 0.0
    %1221 = vmatprep.subr.mxu0 0.0
    %1222 = vmatpush1.msra.mxu0 0.0
    %1223 = vmatprep.subr.mxu0 0.0
    %1224 = vmatpush1.msra.mxu0 0.0
    %1225 = vmatprep.subr.mxu0 0.0
    %1226 = vmatpush1.msra.mxu0 0.0
    %1227 = vmatprep.subr.mxu0 0.0
    %1228 = vmatpush1.msra.mxu0 0.0
    %1229 = vmatprep.subr.mxu0 0.0
    %1230 = vmatpush1.msra.mxu0 0.0
    %1231 = vmatprep.subr.mxu0 0.0
    %1232 = vmatpush1.msra.mxu0 0.0
    %1233 = vmatprep.subr.mxu0 0.0
    %1234 = vmatpush1.msra.mxu0 0.0
    %1235 = vmatprep.subr.mxu0 0.0
    %1236 = vmatpush1.msra.mxu0 0.0
    %1237 = vmatprep.subr.mxu0 0.0
    %1238 = vmatpush1.msra.mxu0 0.0
    %1239 = vmatprep.subr.mxu0 0.0
    %1240 = vmatpush1.msra.mxu0 0.0
    %1241 = vmatprep.subr.mxu0 0.0
    %1242 = vmatpush1.msra.mxu0 0.0
    %1243 = vmatprep.mubr.f32.mxu0 0.0
    %1244 = vmatmul.mubr.f32.gmra.mrb[0].mxu0 %v1156
    %v1245 = vpop.f32.mrb[0].mxu0
    %v1246 = vadd.f32 %v1154, %v1245
    %v1247 = vpop.f32.mrb[0].mxu0
    %1248 = vmatprep.mubr.f32.mxu0 0.0
    %1249 = vmatmul.mubr.f32.gmra.mrb[0].mxu0 %v1159
    %v1250 = vpop.f32.mrb[0].mxu0
    %v1251 = vadd.f32 %v1154, %v1250
    %v1252 = vpop.f32.mrb[0].mxu0
    %1253 = vmatprep.mubr.f32.mxu0 0.0
    %1254 = vmatmul.mubr.f32.gmra.mrb[0].mxu0 %v1162
    %v1255 = vpop.f32.mrb[0].mxu0
    %v1256 = vadd.f32 %v1154, %v1255
    %v1257 = vpop.f32.mrb[0].mxu0
    %1258 = vmatprep.mubr.f32.mxu0 0.0
    %1259 = vmatmul.mubr.f32.gmra.mrb[0].mxu0 %v1165
    %v1260 = vpop.f32.mrb[0].mxu0
    %v1261 = vadd.f32 %v1154, %v1260
    %v1262 = vpop.f32.mrb[0].mxu0
    %1263 = vmatprep.mubr.f32.mxu0 0.0
    %1264 = vmatmul.mubr.f32.gmra.mrb[0].mxu0 %v1168
    %v1265 = vpop.f32.mrb[0].mxu0
    %v1266 = vadd.f32 %v1154, %v1265
    %v1267 = vpop.f32.mrb[0].mxu0
    %1268 = vmatprep.mubr.f32.mxu0 0.0
    %1269 = vmatmul.mubr.f32.gmra.mrb[0].mxu0 %v1171
    %v1270 = vpop.f32.mrb[0].mxu0
    %v1271 = vadd.f32 %v1154, %v1270
    %v1272 = vpop.f32.mrb[0].mxu0
    %1273 = vmatprep.mubr.f32.mxu0 0.0
    %1274 = vmatmul.mubr.f32.gmra.mrb[0].mxu0 %v1174
    %v1275 = vpop.f32.mrb[0].mxu0
    %v1276 = vadd.f32 %v1154, %v1275
    %v1277 = vpop.f32.mrb[0].mxu0
    %1278 = vmatprep.mubr.f32.mxu0 0.0
    %1279 = vmatmul.mubr.f32.gmra.mrb[0].mxu0 %v1177
    %v1280 = vpop.f32.mrb[0].mxu0
    %v1281 = vadd.f32 %v1154, %v1280
    %v1282 = vpop.f32.mrb[0].mxu0
    %1283 = vdwg.mxu0
    %1284 = vst [vmem:[#allocation9] sm:$0xff] %v1246
    %1285 = vst [vmem:[#allocation9 + $0x8] sm:$0xff] %v1251
    %1286 = vst [vmem:[#allocation9 + $0x10] sm:$0xff] %v1256
    %1287 = vst [vmem:[#allocation9 + $0x18] sm:$0xff] %v1261
    %1288 = vst [vmem:[#allocation9 + $0x20] sm:$0xff] %v1266
    %1289 = vst [vmem:[#allocation9 + $0x28] sm:$0xff] %v1271
    %1290 = vst [vmem:[#allocation9 + $0x30] sm:$0xff] %v1276
    %1291 = vst [vmem:[#allocation9 + $0x38] sm:$0xff] %v1281
    // Predicated region
    $region18: #{tpu_custom_call.1} parent=1 // pred_check
      _
    $region19: #{tpu_custom_call.1} parent=1 // pred_check_branch
      %1293 = sbr.rel (0) target = $region21
    $region20: #{tpu_custom_call.1} parent=1 // pred_region
      %s1295 = ssub.s32 1024, 1024
      %1296 = vsyncadd [#allocation6], %s1295
      %s1297 = sshll.u32 [#allocation9], 4
      %s1298 = int_to_ptr.vmem [resolvable:$true] %s1297
      %1303 = dma.vmem_to_hbm [thread:$0]  %s1298, 1024, %s2, [#allocation6], 128, 128, 8
    $region21: #{tpu_custom_call.1} parent=1 // pred_fallthru
      _
    // Predicated region
    $region22: #{tpu_custom_call.1} parent=1 // pred_check
      _
    $region23: #{tpu_custom_call.1} parent=1 // pred_check_branch
      %1305 = sbr.rel (0) target = $region25
    $region24: #{tpu_custom_call.1} parent=1 // pred_region
      %1306 = dma.done [#allocation6], 1024
    $region25: #{tpu_custom_call.1} parent=1 // pred_fallthru
      _
    %1307 = vsyncpa [#allocation5], 1
    %1308 = vsyncpa [#allocation8], 1
    %1309 = vsyncpa [#allocation6], 1

</llo_original>
